<compile_context>
chip_gen: v7x
topology: tpu7x:2x2x1
jax: 0.10.0
libtpu: 0.0.40
codegen_flags: <defaults>
</compile_context>

<pallas_src>
import functools

import jax
import jax.numpy as jnp
from jax.experimental import pallas as pl
from jax.experimental.pallas import tpu as pltpu

_COMPUTE_DTYPE = jnp.bfloat16          # MXU operand dtype (f32 accumulation)
_VMEM_LIMIT = 32 * 1024 * 1024         # <= v7x 64 MiB physical, >= v5e 16 MiB default


def _pick_tile(dim, target, align):
    """Largest divisor of `dim` that is <= target and a multiple of `align`.

    Falls back to the full extent (always a legal block size) if none exists.
    """
    if dim <= target:
        return dim
    for d in range(target, 0, -1):
        if dim % d == 0 and d % align == 0:
            return d
    return dim


# ----------------------------------------------------------------------------
# Pallas kernels
# ----------------------------------------------------------------------------
def _conv_relu_pool_kernel(p_ref, w_ref, b_ref, o_ref, *, fused):
    """Fused 3x3-conv (im2col matmul) + bias + ReLU + 2x2 max-pool.

    p_ref : (BN, 4, TM, K) bf16 patches (pool-position axis of size 4)
    w_ref : (K, Cout)      bf16
    b_ref : (1, Cout)      f32
    o_ref : (BN, TM, Cout) f32
    """
    BN, P, TM, K = p_ref.shape
    Cout = w_ref.shape[1]
    w = w_ref[...]
    b = b_ref[...]
    if fused:
        # One tall matmul over all (BN * 4 * TM) rows -> better MXU cadence.
        y = jnp.dot(p_ref[...].reshape(BN * P * TM, K), w,
                    preferred_element_type=jnp.float32)
        y = jnp.maximum(y + b, 0.0)                      # bias + ReLU in f32
        y = y.reshape(BN, P, TM, Cout)                   # leading-dim split: free
        out = jnp.maximum(jnp.maximum(y[:, 0], y[:, 1]), # MaxPool2d(2): 3 vmax
                          jnp.maximum(y[:, 2], y[:, 3]))
        o_ref[...] = out.astype(o_ref.dtype)
    else:
        # Fallback (only taken when TM is not 16-aligned): per-position matmuls.
        for bn in range(BN):
            out = None
            for j in range(P):
                y = jnp.dot(p_ref[bn, j], w, preferred_element_type=jnp.float32) + b
                y = jnp.maximum(y, 0.0)
                out = y if out is None else jnp.maximum(out, y)
            o_ref[bn] = out.astype(o_ref.dtype)


def _dense_kernel(x_ref, w_ref, b_ref, o_ref, acc_ref, *, relu):
    """Tiled Linear (+ optional ReLU) with f32 VMEM accumulator over the K axis."""
    k = pl.program_id(2)

    @pl.when(k == 0)
    def _():
        acc_ref[...] = jnp.zeros_like(acc_ref)

    acc_ref[...] += jnp.dot(x_ref[...], w_ref[...],
                            preferred_element_type=jnp.float32)

    @pl.when(k == pl.num_programs(2) - 1)
    def _():
        y = acc_ref[...] + b_ref[...]
        if relu:
            y = jnp.maximum(y, 0.0)
        o_ref[...] = y.astype(o_ref.dtype)


# ----------------------------------------------------------------------------
# Wrappers (glue: padding / im2col / tiling choices in plain JAX)
# ----------------------------------------------------------------------------
def _im2col_pool_arranged(x_nhwc, compute_dtype):
    """im2col patches grouped by 2x2 pooling position: (N, 4, (H/2)*(W/2), 9*Cin)."""
    N, H, W, Cin = x_nhwc.shape
    x = x_nhwc.astype(compute_dtype)                       # bf16: halves HBM bytes
    xpad = jnp.pad(x, ((0, 0), (1, 1), (1, 1), (0, 0)))
    cols = [xpad[:, dy:dy + H, dx:dx + W, :] for dy in range(3) for dx in range(3)]
    patches = jnp.concatenate(cols, axis=-1)               # (N, H, W, 9*Cin)
    p = patches.reshape(N, H // 2, 2, W // 2, 2, 9 * Cin)
    p = jnp.transpose(p, (0, 2, 4, 1, 3, 5))               # (N, 2, 2, H/2, W/2, 9*Cin)
    return p.reshape(N, 4, (H // 2) * (W // 2), 9 * Cin)


def conv3x3_relu_pool(x_nhwc, w_flat, b):
    """x: (N, H, W, Cin) -> (N, H/2, W/2, Cout) via a single fused Pallas kernel."""
    N, H, W, Cin = x_nhwc.shape
    assert H % 2 == 0 and W % 2 == 0, "MaxPool2d(2) path requires even H and W"
    K, Cout = w_flat.shape
    assert K == 9 * Cin
    M = (H // 2) * (W // 2)

    p = _im2col_pool_arranged(x_nhwc, _COMPUTE_DTYPE)      # (N, 4, M, K) bf16
    wl = w_flat.astype(_COMPUTE_DTYPE)
    bl = b.reshape(1, Cout).astype(jnp.float32)

    # Tile pooled-pixel axis; batch several images per step when images are small.
    TM = _pick_tile(M, 512, 8)
    rows_per_img = 4 * TM
    BN = _pick_tile(N, min(max(1, 512 // rows_per_img), 8), 1)
    if N > 1 and (N // BN) * (M // TM) < 2:
        # keep >= 2 grid steps so both v7x TensorCores get work
        BN = _pick_tile(N, max(1, N // 2), 1)
    fused = (TM % 16 == 0)                                 # bf16 sublane packing

    grid = (N // BN, M // TM)
    cost = pl.CostEstimate(
        flops=2 * N * 4 * M * K * Cout,
        transcendentals=0,
        bytes_accessed=int(p.size * p.dtype.itemsize + wl.size * 2
                           + bl.size * 4 + N * M * Cout * 4),
    )

    out = pl.pallas_call(
        functools.partial(_conv_relu_pool_kernel, fused=fused),
        out_shape=jax.ShapeDtypeStruct((N, M, Cout), jnp.float32),
        grid=grid,
        in_specs=[
            pl.BlockSpec((BN, 4, TM, K), lambda n, m: (n, 0, m, 0)),
            pl.BlockSpec((K, Cout), lambda n, m: (0, 0)),
            pl.BlockSpec((1, Cout), lambda n, m: (0, 0)),
        ],
        out_specs=pl.BlockSpec((BN, TM, Cout), lambda n, m: (n, m, 0)),
        compiler_params=pltpu.CompilerParams(
            dimension_semantics=("parallel", "parallel"),
            vmem_limit_bytes=_VMEM_LIMIT),
        cost_estimate=cost,
    )(p, wl, bl)
    return out.reshape(N, H // 2, W // 2, Cout)


def dense(x, w, b, *, relu):
    """x: (B, Din) @ w: (Din, Dout) + b (+ ReLU), tiled over (B, Dout, Din)."""
    B, Din = x.shape
    Dout = w.shape[1]
    xl = x.astype(_COMPUTE_DTYPE)
    wl = w.astype(_COMPUTE_DTYPE)
    bl = b.reshape(1, Dout).astype(jnp.float32)

    TB = _pick_tile(B, 256, 8)
    TN = _pick_tile(Dout, 512, 128)
    TK = _pick_tile(Din, 1024, 128)
    grid = (B // TB, Dout // TN, Din // TK)

    cost = pl.CostEstimate(
        flops=2 * B * Din * Dout,
        transcendentals=0,
        bytes_accessed=int((B * Din + Din * Dout) * 2 + Dout * 4 + B * Dout * 4),
    )

    return pl.pallas_call(
        functools.partial(_dense_kernel, relu=relu),
        out_shape=jax.ShapeDtypeStruct((B, Dout), jnp.float32),
        grid=grid,
        in_specs=[
            pl.BlockSpec((TB, TK), lambda bi, n, k: (bi, k)),
            pl.BlockSpec((TK, TN), lambda bi, n, k: (k, n)),
            pl.BlockSpec((1, TN), lambda bi, n, k: (0, n)),
        ],
        out_specs=pl.BlockSpec((TB, TN), lambda bi, n, k: (bi, n)),
        scratch_shapes=[pltpu.VMEM((TB, TN), jnp.float32)],
        compiler_params=pltpu.CompilerParams(
            dimension_semantics=("parallel", "parallel", "arbitrary"),
            vmem_limit_bytes=_VMEM_LIMIT),
        cost_estimate=cost,
    )(xl, wl, bl)


# ----------------------------------------------------------------------------
# Model: parameter init + forward (mirrors CNN2D.forward)
# ----------------------------------------------------------------------------
def init_params(key, input_shape, conv_sizes, dense_sizes, output_size):
    """Init mimicking PyTorch default U(-1/sqrt(fan_in), 1/sqrt(fan_in))."""
    assert input_shape[1] % (2 ** len(conv_sizes)) == 0
    assert input_shape[2] % (2 ** len(conv_sizes)) == 0

    conv_params = []
    in_c = input_shape[0]
    for c in conv_sizes:
        key, kw, kb = jax.random.split(key, 3)
        bound = 1.0 / jnp.sqrt(9.0 * in_c)
        w = jax.random.uniform(kw, (9 * in_c, c), jnp.float32, -bound, bound)
        b = jax.random.uniform(kb, (c,), jnp.float32, -bound, bound)
        conv_params.append((w, b))
        in_c = c

    in_h = input_shape[1] // 2 ** len(conv_sizes)
    in_w = input_shape[2] // 2 ** len(conv_sizes)
    in_size = in_h * in_w * in_c
    dense_params = []
    for li, d in enumerate(list(dense_sizes) + [output_size]):
        key, kw, kb = jax.random.split(key, 3)
        bound = 1.0 / jnp.sqrt(1.0 * in_size)
        w = jax.random.uniform(kw, (in_size, d), jnp.float32, -bound, bound)
        if li == 0:
            # Fold the PyTorch CHW-flatten permutation into the first dense
            # weight so the forward pass can flatten NHWC directly (removes a
            # full HBM transpose at runtime; bit-identical math).
            w = (w.reshape(in_c, in_h, in_w, d)
                   .transpose(1, 2, 0, 3)
                   .reshape(in_size, d))
        b = jax.random.uniform(kb, (d,), jnp.float32, -bound, bound)
        dense_params.append((w, b))
        in_size = d
    return conv_params, dense_params


@jax.jit
def cnn2d_forward(x_nchw, conv_params, dense_params):
    h = jnp.transpose(x_nchw, (0, 2, 3, 1))               # NCHW -> NHWC
    for w, b in conv_params:
        h = conv3x3_relu_pool(h, w, b)                    # Conv3x3(pad=1)+ReLU+MaxPool2
    h = h.reshape(h.shape[0], -1)                          # NHWC flatten (perm in W1)
    n_dense = len(dense_params)
    for i, (w, b) in enumerate(dense_params):
        h = dense(h, w, b, relu=(i < n_dense - 1))        # Linear (+ReLU), Dropout(0)=id
    return h


# ----------------------------------------------------------------------------
if __name__ == "__main__":
    # Config consistent with the module: input_shape=(4,16,16), conv=[8,16],
    # dense=[32], output=10, batch=2.
    input_shape = (4, 16, 16)
    conv_sizes = [8, 16]
    dense_sizes = [32]
    output_size = 10
    batch = 2

    key = jax.random.PRNGKey(0)
    key, kx = jax.random.split(key)
    x = jax.random.normal(kx, (batch,) + input_shape, dtype=jnp.float32)

    conv_params, dense_params = init_params(
        key, input_shape, conv_sizes, dense_sizes, output_size)

    logits = cnn2d_forward(x, conv_params, dense_params)
    jax.block_until_ready(logits)
    assert logits.shape == (batch, output_size), logits.shape
    assert bool(jnp.all(jnp.isfinite(logits)))
    print("KERNEL_OK")
</pallas_src>

<mosaic_0001>
module attributes {stable_mosaic.version = 11 : i64} {
  func.func @_conv_relu_pool_kernel(%arg0: i32, %arg1: i32, %arg2: memref<1x4x64x36xbf16, #tpu.memory_space<vmem>>, %arg3: memref<36x8xbf16, #tpu.memory_space<vmem>>, %arg4: memref<1x8xf32, #tpu.memory_space<vmem>>, %arg5: memref<1x64x8xf32, #tpu.memory_space<vmem>>) attributes {dimension_semantics = [#tpu.dimension_semantics<parallel>, #tpu.dimension_semantics<parallel>], iteration_bounds = array<i64: 2, 1>, scalar_prefetch = 0 : i64, scratch_operands = 0 : i64, tpu.core_type = #tpu.core_type<tc>, window_params = [{transform_indices = @transform_0, window_bounds = array<i64: 1, 4, 64, 36>}, {pipeline_mode = #tpu.pipeline_mode<synchronous>, transform_indices = @transform_1, window_bounds = array<i64: 36, 8>}, {pipeline_mode = #tpu.pipeline_mode<synchronous>, transform_indices = @transform_2, window_bounds = array<i64: 1, 8>}, {transform_indices = @transform_3, window_bounds = array<i64: 1, 64, 8>}]} {
    %c0 = arith.constant 0 : index
    %c0_0 = arith.constant 0 : index
    %0 = vector.load %arg3[%c0, %c0_0] : memref<36x8xbf16, #tpu.memory_space<vmem>>, vector<36x8xbf16>
    %c0_1 = arith.constant 0 : index
    %c0_2 = arith.constant 0 : index
    %1 = vector.load %arg4[%c0_1, %c0_2] : memref<1x8xf32, #tpu.memory_space<vmem>>, vector<1x8xf32>
    %c0_3 = arith.constant 0 : index
    %c0_4 = arith.constant 0 : index
    %c0_5 = arith.constant 0 : index
    %c0_6 = arith.constant 0 : index
    %2 = vector.load %arg2[%c0_3, %c0_4, %c0_5, %c0_6] : memref<1x4x64x36xbf16, #tpu.memory_space<vmem>>, vector<1x4x64x36xbf16>
    %3 = vector.shape_cast %2 : vector<1x4x64x36xbf16> to vector<256x36xbf16>
    %cst = arith.constant dense<0.000000e+00> : vector<256x8xf32>
    %4 = tpu.matmul %3, %0, %cst {dimension_numbers = #tpu.dot_dimension_numbers<[1], [0], [0], [1], [0, 0, 1, 1], [], []>} : vector<256x36xbf16>, vector<36x8xbf16>, vector<256x8xf32> -> vector<256x8xf32>
    %5 = vector.broadcast %1 : vector<1x8xf32> to vector<256x8xf32>
    %6 = arith.addf %4, %5 : vector<256x8xf32>
    %cst_7 = arith.constant 0.000000e+00 : f32
    %7 = vector.broadcast %cst_7 : f32 to vector<256x8xf32>
    %8 = arith.maximumf %6, %7 : vector<256x8xf32>
    %9 = vector.shape_cast %8 : vector<256x8xf32> to vector<1x4x64x8xf32>
    %10 = vector.extract_strided_slice %9 {offsets = [0, 0, 0, 0], sizes = [1, 1, 64, 8], strides = [1, 1, 1, 1]} : vector<1x4x64x8xf32> to vector<1x1x64x8xf32>
    %11 = vector.shape_cast %10 : vector<1x1x64x8xf32> to vector<1x64x8xf32>
    %12 = vector.extract_strided_slice %9 {offsets = [0, 1, 0, 0], sizes = [1, 1, 64, 8], strides = [1, 1, 1, 1]} : vector<1x4x64x8xf32> to vector<1x1x64x8xf32>
    %13 = vector.shape_cast %12 : vector<1x1x64x8xf32> to vector<1x64x8xf32>
    %14 = arith.maximumf %11, %13 : vector<1x64x8xf32>
    %15 = vector.extract_strided_slice %9 {offsets = [0, 2, 0, 0], sizes = [1, 1, 64, 8], strides = [1, 1, 1, 1]} : vector<1x4x64x8xf32> to vector<1x1x64x8xf32>
    %16 = vector.shape_cast %15 : vector<1x1x64x8xf32> to vector<1x64x8xf32>
    %17 = vector.extract_strided_slice %9 {offsets = [0, 3, 0, 0], sizes = [1, 1, 64, 8], strides = [1, 1, 1, 1]} : vector<1x4x64x8xf32> to vector<1x1x64x8xf32>
    %18 = vector.shape_cast %17 : vector<1x1x64x8xf32> to vector<1x64x8xf32>
    %19 = arith.maximumf %16, %18 : vector<1x64x8xf32>
    %20 = arith.maximumf %14, %19 : vector<1x64x8xf32>
    %c0_8 = arith.constant 0 : index
    %c0_9 = arith.constant 0 : index
    %c0_10 = arith.constant 0 : index
    %21 = vector.load %arg5[%c0_8, %c0_9, %c0_10] : memref<1x64x8xf32, #tpu.memory_space<vmem>>, vector<1x64x8xf32>
    tpu.vector_store %arg5[%c0_8, %c0_9, %c0_10], %20 {strides = array<i32>} : memref<1x64x8xf32, #tpu.memory_space<vmem>>, vector<1x64x8xf32>,
    return
  }
  func.func @transform_0(%arg0: i32, %arg1: i32) -> (i32, i32, i32, i32) {
    %c0_i32 = arith.constant 0 : i32
    %c0_i32_0 = arith.constant 0 : i32
    %c0_i32_1 = arith.constant 0 : i32
    return %arg0, %c0_i32, %arg1, %c0_i32_0 : i32, i32, i32, i32
  }
  func.func @transform_1(%arg0: i32, %arg1: i32) -> (i32, i32) {
    %c0_i32 = arith.constant 0 : i32
    %c0_i32_0 = arith.constant 0 : i32
    %c0_i32_1 = arith.constant 0 : i32
    return %c0_i32, %c0_i32_0 : i32, i32
  }
  func.func @transform_2(%arg0: i32, %arg1: i32) -> (i32, i32) {
    %c0_i32 = arith.constant 0 : i32
    %c0_i32_0 = arith.constant 0 : i32
    %c0_i32_1 = arith.constant 0 : i32
    return %c0_i32, %c0_i32_0 : i32, i32
  }
  func.func @transform_3(%arg0: i32, %arg1: i32) -> (i32, i32, i32) {
    %c0_i32 = arith.constant 0 : i32
    %c0_i32_0 = arith.constant 0 : i32
    return %arg0, %arg1, %c0_i32 : i32, i32, i32
  }
}

module attributes {stable_mosaic.version = 11 : i64} {
  func.func @_dense_kernel(%arg0: i32, %arg1: i32, %arg2: i32, %arg3: memref<2x256xbf16, #tpu.memory_space<vmem>>, %arg4: memref<256x32xbf16, #tpu.memory_space<vmem>>, %arg5: memref<1x32xf32, #tpu.memory_space<vmem>>, %arg6: memref<2x32xf32, #tpu.memory_space<vmem>>, %arg7: memref<2x32xf32, #tpu.memory_space<vmem>>) attributes {dimension_semantics = [#tpu.dimension_semantics<parallel>, #tpu.dimension_semantics<parallel>, #tpu.dimension_semantics<arbitrary>], iteration_bounds = array<i64: 1, 1, 1>, scalar_prefetch = 0 : i64, scratch_operands = 1 : i64, tpu.core_type = #tpu.core_type<tc>, window_params = [{transform_indices = @transform_0, window_bounds = array<i64: 2, 256>}, {transform_indices = @transform_1, window_bounds = array<i64: 256, 32>}, {transform_indices = @transform_2, window_bounds = array<i64: 1, 32>}, {transform_indices = @transform_3, window_bounds = array<i64: 2, 32>}]} {
    %c0_i32 = arith.constant 0 : i32
    %0 = arith.cmpi eq, %arg2, %c0_i32 : i32
    %1 = arith.extui %0 : i1 to i32
    %c0_i32_0 = arith.constant 0 : i32
    %2 = arith.cmpi ne, %1, %c0_i32_0 : i32
    scf.if %2 {
      %cst_10 = arith.constant 0.000000e+00 : f32
      %12 = vector.broadcast %cst_10 : f32 to vector<2x32xf32>
      %c0_11 = arith.constant 0 : index
      %c0_12 = arith.constant 0 : index
      %13 = vector.load %arg7[%c0_11, %c0_12] : memref<2x32xf32, #tpu.memory_space<vmem>>, vector<2x32xf32>
      tpu.vector_store %arg7[%c0_11, %c0_12], %12 {strides = array<i32>} : memref<2x32xf32, #tpu.memory_space<vmem>>, vector<2x32xf32>,
    } else {
    }
    %c0 = arith.constant 0 : index
    %c0_1 = arith.constant 0 : index
    %3 = vector.load %arg7[%c0, %c0_1] : memref<2x32xf32, #tpu.memory_space<vmem>>, vector<2x32xf32>
    %c0_2 = arith.constant 0 : index
    %c0_3 = arith.constant 0 : index
    %4 = vector.load %arg3[%c0_2, %c0_3] : memref<2x256xbf16, #tpu.memory_space<vmem>>, vector<2x256xbf16>
    %c0_4 = arith.constant 0 : index
    %c0_5 = arith.constant 0 : index
    %5 = vector.load %arg4[%c0_4, %c0_5] : memref<256x32xbf16, #tpu.memory_space<vmem>>, vector<256x32xbf16>
    %cst = arith.constant dense<0.000000e+00> : vector<2x32xf32>
    %6 = tpu.matmul %4, %5, %cst {dimension_numbers = #tpu.dot_dimension_numbers<[1], [0], [0], [1], [0, 0, 1, 1], [], []>} : vector<2x256xbf16>, vector<256x32xbf16>, vector<2x32xf32> -> vector<2x32xf32>
    %7 = arith.addf %3, %6 : vector<2x32xf32>
    %c0_6 = arith.constant 0 : index
    %c0_7 = arith.constant 0 : index
    %8 = vector.load %arg7[%c0_6, %c0_7] : memref<2x32xf32, #tpu.memory_space<vmem>>, vector<2x32xf32>
    tpu.vector_store %arg7[%c0_6, %c0_7], %7 {strides = array<i32>} : memref<2x32xf32, #tpu.memory_space<vmem>>, vector<2x32xf32>,
    %c0_i32_8 = arith.constant 0 : i32
    %9 = arith.cmpi eq, %arg2, %c0_i32_8 : i32
    %10 = arith.extui %9 : i1 to i32
    %c0_i32_9 = arith.constant 0 : i32
    %11 = arith.cmpi ne, %10, %c0_i32_9 : i32
    scf.if %11 {
      %c0_10 = arith.constant 0 : index
      %c0_11 = arith.constant 0 : index
      %12 = vector.load %arg7[%c0_10, %c0_11] : memref<2x32xf32, #tpu.memory_space<vmem>>, vector<2x32xf32>
      %c0_12 = arith.constant 0 : index
      %c0_13 = arith.constant 0 : index
      %13 = vector.load %arg5[%c0_12, %c0_13] : memref<1x32xf32, #tpu.memory_space<vmem>>, vector<1x32xf32>
      %14 = vector.broadcast %13 : vector<1x32xf32> to vector<2x32xf32>
      %15 = arith.addf %12, %14 : vector<2x32xf32>
      %cst_14 = arith.constant 0.000000e+00 : f32
      %16 = vector.broadcast %cst_14 : f32 to vector<2x32xf32>
      %17 = arith.maximumf %15, %16 : vector<2x32xf32>
      %c0_15 = arith.constant 0 : index
      %c0_16 = arith.constant 0 : index
      %18 = vector.load %arg6[%c0_15, %c0_16] : memref<2x32xf32, #tpu.memory_space<vmem>>, vector<2x32xf32>
      tpu.vector_store %arg6[%c0_15, %c0_16], %17 {strides = array<i32>} : memref<2x32xf32, #tpu.memory_space<vmem>>, vector<2x32xf32>,
    } else {
    }
    return
  }
  func.func @transform_0(%arg0: i32, %arg1: i32, %arg2: i32) -> (i32, i32) {
    %c0_i32 = arith.constant 0 : i32
    return %arg0, %arg2 : i32, i32
  }
  func.func @transform_1(%arg0: i32, %arg1: i32, %arg2: i32) -> (i32, i32) {
    %c0_i32 = arith.constant 0 : i32
    return %arg2, %arg1 : i32, i32
  }
  func.func @transform_2(%arg0: i32, %arg1: i32, %arg2: i32) -> (i32, i32) {
    %c0_i32 = arith.constant 0 : i32
    %c0_i32_0 = arith.constant 0 : i32
    return %c0_i32, %arg1 : i32, i32
  }
  func.func @transform_3(%arg0: i32, %arg1: i32, %arg2: i32) -> (i32, i32) {
    %c0_i32 = arith.constant 0 : i32
    return %arg0, %arg1 : i32, i32
  }
}

module attributes {stable_mosaic.version = 11 : i64} {
  func.func @_conv_relu_pool_kernel(%arg0: i32, %arg1: i32, %arg2: memref<1x4x16x72xbf16, #tpu.memory_space<vmem>>, %arg3: memref<72x16xbf16, #tpu.memory_space<vmem>>, %arg4: memref<1x16xf32, #tpu.memory_space<vmem>>, %arg5: memref<1x16x16xf32, #tpu.memory_space<vmem>>) attributes {dimension_semantics = [#tpu.dimension_semantics<parallel>, #tpu.dimension_semantics<parallel>], iteration_bounds = array<i64: 2, 1>, scalar_prefetch = 0 : i64, scratch_operands = 0 : i64, tpu.core_type = #tpu.core_type<tc>, window_params = [{transform_indices = @transform_0, window_bounds = array<i64: 1, 4, 16, 72>}, {pipeline_mode = #tpu.pipeline_mode<synchronous>, transform_indices = @transform_1, window_bounds = array<i64: 72, 16>}, {pipeline_mode = #tpu.pipeline_mode<synchronous>, transform_indices = @transform_2, window_bounds = array<i64: 1, 16>}, {transform_indices = @transform_3, window_bounds = array<i64: 1, 16, 16>}]} {
    %c0 = arith.constant 0 : index
    %c0_0 = arith.constant 0 : index
    %0 = vector.load %arg3[%c0, %c0_0] : memref<72x16xbf16, #tpu.memory_space<vmem>>, vector<72x16xbf16>
    %c0_1 = arith.constant 0 : index
    %c0_2 = arith.constant 0 : index
    %1 = vector.load %arg4[%c0_1, %c0_2] : memref<1x16xf32, #tpu.memory_space<vmem>>, vector<1x16xf32>
    %c0_3 = arith.constant 0 : index
    %c0_4 = arith.constant 0 : index
    %c0_5 = arith.constant 0 : index
    %c0_6 = arith.constant 0 : index
    %2 = vector.load %arg2[%c0_3, %c0_4, %c0_5, %c0_6] : memref<1x4x16x72xbf16, #tpu.memory_space<vmem>>, vector<1x4x16x72xbf16>
    %3 = vector.shape_cast %2 : vector<1x4x16x72xbf16> to vector<64x72xbf16>
    %cst = arith.constant dense<0.000000e+00> : vector<64x16xf32>
    %4 = tpu.matmul %3, %0, %cst {dimension_numbers = #tpu.dot_dimension_numbers<[1], [0], [0], [1], [0, 0, 1, 1], [], []>} : vector<64x72xbf16>, vector<72x16xbf16>, vector<64x16xf32> -> vector<64x16xf32>
    %5 = vector.broadcast %1 : vector<1x16xf32> to vector<64x16xf32>
    %6 = arith.addf %4, %5 : vector<64x16xf32>
    %cst_7 = arith.constant 0.000000e+00 : f32
    %7 = vector.broadcast %cst_7 : f32 to vector<64x16xf32>
    %8 = arith.maximumf %6, %7 : vector<64x16xf32>
    %9 = vector.shape_cast %8 : vector<64x16xf32> to vector<1x4x16x16xf32>
    %10 = vector.extract_strided_slice %9 {offsets = [0, 0, 0, 0], sizes = [1, 1, 16, 16], strides = [1, 1, 1, 1]} : vector<1x4x16x16xf32> to vector<1x1x16x16xf32>
    %11 = vector.shape_cast %10 : vector<1x1x16x16xf32> to vector<1x16x16xf32>
    %12 = vector.extract_strided_slice %9 {offsets = [0, 1, 0, 0], sizes = [1, 1, 16, 16], strides = [1, 1, 1, 1]} : vector<1x4x16x16xf32> to vector<1x1x16x16xf32>
    %13 = vector.shape_cast %12 : vector<1x1x16x16xf32> to vector<1x16x16xf32>
    %14 = arith.maximumf %11, %13 : vector<1x16x16xf32>
    %15 = vector.extract_strided_slice %9 {offsets = [0, 2, 0, 0], sizes = [1, 1, 16, 16], strides = [1, 1, 1, 1]} : vector<1x4x16x16xf32> to vector<1x1x16x16xf32>
    %16 = vector.shape_cast %15 : vector<1x1x16x16xf32> to vector<1x16x16xf32>
    %17 = vector.extract_strided_slice %9 {offsets = [0, 3, 0, 0], sizes = [1, 1, 16, 16], strides = [1, 1, 1, 1]} : vector<1x4x16x16xf32> to vector<1x1x16x16xf32>
    %18 = vector.shape_cast %17 : vector<1x1x16x16xf32> to vector<1x16x16xf32>
    %19 = arith.maximumf %16, %18 : vector<1x16x16xf32>
    %20 = arith.maximumf %14, %19 : vector<1x16x16xf32>
    %c0_8 = arith.constant 0 : index
    %c0_9 = arith.constant 0 : index
    %c0_10 = arith.constant 0 : index
    %21 = vector.load %arg5[%c0_8, %c0_9, %c0_10] : memref<1x16x16xf32, #tpu.memory_space<vmem>>, vector<1x16x16xf32>
    tpu.vector_store %arg5[%c0_8, %c0_9, %c0_10], %20 {strides = array<i32>} : memref<1x16x16xf32, #tpu.memory_space<vmem>>, vector<1x16x16xf32>,
    return
  }
  func.func @transform_0(%arg0: i32, %arg1: i32) -> (i32, i32, i32, i32) {
    %c0_i32 = arith.constant 0 : i32
    %c0_i32_0 = arith.constant 0 : i32
    %c0_i32_1 = arith.constant 0 : i32
    return %arg0, %c0_i32, %arg1, %c0_i32_0 : i32, i32, i32, i32
  }
  func.func @transform_1(%arg0: i32, %arg1: i32) -> (i32, i32) {
    %c0_i32 = arith.constant 0 : i32
    %c0_i32_0 = arith.constant 0 : i32
    %c0_i32_1 = arith.constant 0 : i32
    return %c0_i32, %c0_i32_0 : i32, i32
  }
  func.func @transform_2(%arg0: i32, %arg1: i32) -> (i32, i32) {
    %c0_i32 = arith.constant 0 : i32
    %c0_i32_0 = arith.constant 0 : i32
    %c0_i32_1 = arith.constant 0 : i32
    return %c0_i32, %c0_i32_0 : i32, i32
  }
  func.func @transform_3(%arg0: i32, %arg1: i32) -> (i32, i32, i32) {
    %c0_i32 = arith.constant 0 : i32
    %c0_i32_0 = arith.constant 0 : i32
    return %arg0, %arg1, %c0_i32 : i32, i32, i32
  }
}

module attributes {stable_mosaic.version = 11 : i64} {
  func.func @_dense_kernel(%arg0: i32, %arg1: i32, %arg2: i32, %arg3: memref<2x32xbf16, #tpu.memory_space<vmem>>, %arg4: memref<32x10xbf16, #tpu.memory_space<vmem>>, %arg5: memref<1x10xf32, #tpu.memory_space<vmem>>, %arg6: memref<2x10xf32, #tpu.memory_space<vmem>>, %arg7: memref<2x10xf32, #tpu.memory_space<vmem>>) attributes {dimension_semantics = [#tpu.dimension_semantics<parallel>, #tpu.dimension_semantics<parallel>, #tpu.dimension_semantics<arbitrary>], iteration_bounds = array<i64: 1, 1, 1>, scalar_prefetch = 0 : i64, scratch_operands = 1 : i64, tpu.core_type = #tpu.core_type<tc>, window_params = [{transform_indices = @transform_0, window_bounds = array<i64: 2, 32>}, {transform_indices = @transform_1, window_bounds = array<i64: 32, 10>}, {transform_indices = @transform_2, window_bounds = array<i64: 1, 10>}, {transform_indices = @transform_3, window_bounds = array<i64: 2, 10>}]} {
    %c0_i32 = arith.constant 0 : i32
    %0 = arith.cmpi eq, %arg2, %c0_i32 : i32
    %1 = arith.extui %0 : i1 to i32
    %c0_i32_0 = arith.constant 0 : i32
    %2 = arith.cmpi ne, %1, %c0_i32_0 : i32
    scf.if %2 {
      %cst_10 = arith.constant 0.000000e+00 : f32
      %12 = vector.broadcast %cst_10 : f32 to vector<2x10xf32>
      %c0_11 = arith.constant 0 : index
      %c0_12 = arith.constant 0 : index
      %13 = vector.load %arg7[%c0_11, %c0_12] : memref<2x10xf32, #tpu.memory_space<vmem>>, vector<2x10xf32>
      tpu.vector_store %arg7[%c0_11, %c0_12], %12 {strides = array<i32>} : memref<2x10xf32, #tpu.memory_space<vmem>>, vector<2x10xf32>,
    } else {
    }
    %c0 = arith.constant 0 : index
    %c0_1 = arith.constant 0 : index
    %3 = vector.load %arg7[%c0, %c0_1] : memref<2x10xf32, #tpu.memory_space<vmem>>, vector<2x10xf32>
    %c0_2 = arith.constant 0 : index
    %c0_3 = arith.constant 0 : index
    %4 = vector.load %arg3[%c0_2, %c0_3] : memref<2x32xbf16, #tpu.memory_space<vmem>>, vector<2x32xbf16>
    %c0_4 = arith.constant 0 : index
    %c0_5 = arith.constant 0 : index
    %5 = vector.load %arg4[%c0_4, %c0_5] : memref<32x10xbf16, #tpu.memory_space<vmem>>, vector<32x10xbf16>
    %cst = arith.constant dense<0.000000e+00> : vector<2x10xf32>
    %6 = tpu.matmul %4, %5, %cst {dimension_numbers = #tpu.dot_dimension_numbers<[1], [0], [0], [1], [0, 0, 1, 1], [], []>} : vector<2x32xbf16>, vector<32x10xbf16>, vector<2x10xf32> -> vector<2x10xf32>
    %7 = arith.addf %3, %6 : vector<2x10xf32>
    %c0_6 = arith.constant 0 : index
    %c0_7 = arith.constant 0 : index
    %8 = vector.load %arg7[%c0_6, %c0_7] : memref<2x10xf32, #tpu.memory_space<vmem>>, vector<2x10xf32>
    tpu.vector_store %arg7[%c0_6, %c0_7], %7 {strides = array<i32>} : memref<2x10xf32, #tpu.memory_space<vmem>>, vector<2x10xf32>,
    %c0_i32_8 = arith.constant 0 : i32
    %9 = arith.cmpi eq, %arg2, %c0_i32_8 : i32
    %10 = arith.extui %9 : i1 to i32
    %c0_i32_9 = arith.constant 0 : i32
    %11 = arith.cmpi ne, %10, %c0_i32_9 : i32
    scf.if %11 {
      %c0_10 = arith.constant 0 : index
      %c0_11 = arith.constant 0 : index
      %12 = vector.load %arg7[%c0_10, %c0_11] : memref<2x10xf32, #tpu.memory_space<vmem>>, vector<2x10xf32>
      %c0_12 = arith.constant 0 : index
      %c0_13 = arith.constant 0 : index
      %13 = vector.load %arg5[%c0_12, %c0_13] : memref<1x10xf32, #tpu.memory_space<vmem>>, vector<1x10xf32>
      %14 = vector.broadcast %13 : vector<1x10xf32> to vector<2x10xf32>
      %15 = arith.addf %12, %14 : vector<2x10xf32>
      %c0_14 = arith.constant 0 : index
      %c0_15 = arith.constant 0 : index
      %16 = vector.load %arg6[%c0_14, %c0_15] : memref<2x10xf32, #tpu.memory_space<vmem>>, vector<2x10xf32>
      tpu.vector_store %arg6[%c0_14, %c0_15], %15 {strides = array<i32>} : memref<2x10xf32, #tpu.memory_space<vmem>>, vector<2x10xf32>,
    } else {
    }
    return
  }
  func.func @transform_0(%arg0: i32, %arg1: i32, %arg2: i32) -> (i32, i32) {
    %c0_i32 = arith.constant 0 : i32
    return %arg0, %arg2 : i32, i32
  }
  func.func @transform_1(%arg0: i32, %arg1: i32, %arg2: i32) -> (i32, i32) {
    %c0_i32 = arith.constant 0 : i32
    return %arg2, %arg1 : i32, i32
  }
  func.func @transform_2(%arg0: i32, %arg1: i32, %arg2: i32) -> (i32, i32) {
    %c0_i32 = arith.constant 0 : i32
    %c0_i32_0 = arith.constant 0 : i32
    return %c0_i32, %arg1 : i32, i32
  }
  func.func @transform_3(%arg0: i32, %arg1: i32, %arg2: i32) -> (i32, i32) {
    %c0_i32 = arith.constant 0 : i32
    return %arg0, %arg1 : i32, i32
  }
}

</mosaic_0001>

<llo_original>
// kernel: cnn2d_forward.4
$region0: #{cnn2d_forward.4}
  #allocation0 [shape = 'u32[]', space=smem, size = 0x4, offset = 0x4, fixed_abs, tag = 'smem constant byte address 0x4 - core index']
  #allocation1 [shape = 'u32[144,128]{1,0:T(1,128)}', space=vmem, size = 0x12000, scoped, tag = 'internal scratch']
  %s0 = inlined_call_operand.vmem [shape: bf16[2,4,64,36], index: 0, kind: input, shape index: {}]
  %s1 = inlined_call_operand.vmem [shape: bf16[36,8], index: 1, kind: input, shape index: {}]
  %s2 = inlined_call_operand.vmem [shape: f32[1,8], index: 2, kind: input, shape index: {}]
  %s3 = inlined_call_operand.vmem [shape: f32[2,64,8], index: 3, kind: output, shape index: {}]
  %s4 = sld [smem:[#allocation0]]
  $region45: #{cnn2d_forward.4} parent=0
    _
  %s6 = ssub.s32 1, %s4
  %s7 = scalar_select 0, %s6, %s4
  loop: start=0, step=1, limit=4
  $region2: #{cnn2d_forward.4} parent=0 // loop_pre_header
    _
  $region3: #{cnn2d_forward.4} parent=0 // loop_header
    %s9 = sphi 0, %s13
    %p10 = scmp.ge.s32.totalorder %s9, 4
    %s16 = sphi 0, %s28
    %s17 = sphi 0, %s24
    %s18 = sphi 0, %s16
    %s19 = sphi 0, %s17
    %s20 = sphi 0, %s18
    %s21 = sphi 0, %s19
    %s33 = sphi 0, %s35
    %s36 = sphi 0, %s33
    %s37 = sphi 0, %s36
    %s53 = sphi 0, %s37
    %s57 = sphi 0, %s57
    %s59 = sphi 0, %s57
    %s60 = sphi 0, %s59
    %s74 = sphi 0, %s60
    %s78 = sphi 0, %s78
    %s80 = sphi 0, %s78
    %s81 = sphi 0, %s80
    %s95 = sphi 0, %s81
    %s103 = sphi 0, %s105
    %s106 = sphi 0, %s103
    %s107 = sphi 0, %s106
    %s123 = sphi 0, %s107
  $region4: #{cnn2d_forward.4} parent=0 // loop_header_branch
    %12 = sbr.rel (%p10) target = $region8
  $region5: #{cnn2d_forward.4} parent=0 // loop_body
    %s14 = ssub.s32 %s9, 1
    %s15 = ssub.s32 %s9, 2
    %s22 = sadd.s32 1, %s17
    %p23 = scmp.ge.s32.totalorder %s22, 1
    %s24 = scalar_select %p23, 0, %s22
    %s25 = sadd.s32 1, %s16
    %s26 = scalar_select %p23, %s25, %s16
    %p27 = scmp.ge.s32.totalorder %s26, 2
    %s28 = scalar_select %p27, 0, %s26
    %s29 = ssub.s32 %s16, %s28
    %s30 = ssub.s32 %s17, %s24
    %s31 = sor.u32 %s29, %s30
    %p32 = scmp.eq.s32.totalorder %s31, 0
    %s34 = sadd.s32 %s33, 1
    %s35 = scalar_select %p32, %s33, %s34
    %p38 = pneg %p32
    %p39 = scmp.eq.s32.totalorder %s9, 1
    %p40 = por %p38, %p39
    %p41 = scmp.ne.s32.totalorder %s33, %s36
    %p42 = scmp.eq.s32.totalorder %s9, 0
    %p43 = por %p41, %p42
    %p44 = scmp.ne.s32.totalorder %s33, %s36
    %p45 = scmp.eq.s32.totalorder %s14, 1
    %p46 = por %p44, %p45
    %p47 = scmp.ne.s32.totalorder %s36, %s37
    %p48 = scmp.eq.s32.totalorder %s14, 0
    %p49 = por %p47, %p48
    %p50 = scmp.ne.s32.totalorder %s36, %s37
    %p51 = scmp.eq.s32.totalorder %s15, 1
    %p52 = por %p50, %p51
    %p54 = scmp.ne.s32.totalorder %s37, %s53
    %p55 = scmp.eq.s32.totalorder %s15, 0
    %p56 = por %p54, %p55
    %s58 = sadd.s32 %s57, 1
    %p61 = scmp.eq.s32.totalorder %s9, 1
    %p62 = scmp.ne.s32.totalorder %s57, %s59
    %p63 = scmp.eq.s32.totalorder %s9, 0
    %p64 = por %p62, %p63
    %p65 = scmp.ne.s32.totalorder %s57, %s59
    %p66 = scmp.eq.s32.totalorder %s14, 1
    %p67 = por %p65, %p66
    %p68 = scmp.ne.s32.totalorder %s59, %s60
    %p69 = scmp.eq.s32.totalorder %s14, 0
    %p70 = por %p68, %p69
    %p71 = scmp.ne.s32.totalorder %s59, %s60
    %p72 = scmp.eq.s32.totalorder %s15, 1
    %p73 = por %p71, %p72
    %p75 = scmp.ne.s32.totalorder %s60, %s74
    %p76 = scmp.eq.s32.totalorder %s15, 0
    %p77 = por %p75, %p76
    %s79 = sadd.s32 %s78, 1
    %p82 = scmp.eq.s32.totalorder %s9, 1
    %p83 = scmp.ne.s32.totalorder %s78, %s80
    %p84 = scmp.eq.s32.totalorder %s9, 0
    %p85 = por %p83, %p84
    %p86 = scmp.ne.s32.totalorder %s78, %s80
    %p87 = scmp.eq.s32.totalorder %s14, 1
    %p88 = por %p86, %p87
    %p89 = scmp.ne.s32.totalorder %s80, %s81
    %p90 = scmp.eq.s32.totalorder %s14, 0
    %p91 = por %p89, %p90
    %p92 = scmp.ne.s32.totalorder %s80, %s81
    %p93 = scmp.eq.s32.totalorder %s15, 1
    %p94 = por %p92, %p93
    %p96 = scmp.ne.s32.totalorder %s81, %s95
    %p97 = scmp.eq.s32.totalorder %s15, 0
    %p98 = por %p96, %p97
    %s99 = ssub.s32 %s16, %s28
    %s100 = ssub.s32 %s17, %s24
    %s101 = sor.u32 %s99, %s100
    %p102 = scmp.eq.s32.totalorder %s101, 0
    %s104 = sadd.s32 %s103, 1
    %s105 = scalar_select %p102, %s103, %s104
    %p108 = pneg %p102
    %p109 = scmp.eq.s32.totalorder %s9, 1
    %p110 = por %p108, %p109
    %p111 = scmp.ne.s32.totalorder %s103, %s106
    %p112 = scmp.eq.s32.totalorder %s9, 0
    %p113 = por %p111, %p112
    %p114 = scmp.ne.s32.totalorder %s103, %s106
    %p115 = scmp.eq.s32.totalorder %s14, 1
    %p116 = por %p114, %p115
    %p117 = scmp.ne.s32.totalorder %s106, %s107
    %p118 = scmp.eq.s32.totalorder %s14, 0
    %p119 = por %p117, %p118
    %p120 = scmp.ne.s32.totalorder %s106, %s107
    %p121 = scmp.eq.s32.totalorder %s15, 1
    %p122 = por %p120, %p121
    %p124 = scmp.ne.s32.totalorder %s107, %s123
    %p125 = scmp.eq.s32.totalorder %s15, 0
    %p126 = por %p124, %p125
    %p127 = scmp.le.s32.totalorder 1, %s9
    %p128 = scmp.lt.s32.totalorder %s9, 3
    %p129 = pnand %p127, %p128
    %p130 = pneg %p129
    // Predicated region
    $region9: #{cnn2d_forward.4} parent=5 // pred_check
      _
    $region10: #{cnn2d_forward.4} parent=5 // pred_check_branch
      %132 = sbr.rel (%p129) target = $region12
    $region11: #{cnn2d_forward.4} parent=5 // pred_region
      %s133 = ssub.s32 %s9, 1
      // Predicated region
      $region13: #{cnn2d_forward.4} parent=11 // pred_check
        %p134 = pneg %p70
      $region14: #{cnn2d_forward.4} parent=11 // pred_check_branch
        %136 = sbr.rel (%p134) target = $region16
      $region15: #{cnn2d_forward.4} parent=11 // pred_region
        _
      $region16: #{cnn2d_forward.4} parent=11 // pred_fallthru
        _
      // Predicated region
      $region17: #{cnn2d_forward.4} parent=11 // pred_check
        %p137 = pneg %p91
      $region18: #{cnn2d_forward.4} parent=11 // pred_check_branch
        %139 = sbr.rel (%p137) target = $region20
      $region19: #{cnn2d_forward.4} parent=11 // pred_region
        _
      $region20: #{cnn2d_forward.4} parent=11 // pred_fallthru
        _
    $region12: #{cnn2d_forward.4} parent=5 // pred_fallthru
      _
    %p140 = scmp.lt.s32.totalorder %s9, 2
    // Predicated region
    $region21: #{cnn2d_forward.4} parent=5 // pred_check
      %p141 = pneg %p140
    $region22: #{cnn2d_forward.4} parent=5 // pred_check_branch
      %143 = sbr.rel (%p141) target = $region24
    $region23: #{cnn2d_forward.4} parent=5 // pred_region
      // Predicated region
      $region25: #{cnn2d_forward.4} parent=23 // pred_check
        %p144 = pneg %p43
      $region26: #{cnn2d_forward.4} parent=23 // pred_check_branch
        %146 = sbr.rel (%p144) target = $region28
      $region27: #{cnn2d_forward.4} parent=23 // pred_region
        %s147 = smul.u32 8, %s17
        %p148 = scmp.lt.s32.totalorder %s16, 1
        %s149 = scalar_select %p148, %s16, 1
        %p150 = scmp.lt.s32.totalorder %s147, 7
        %s151 = scalar_select %p150, %s147, 7
        %s152 = smul.addr %s149, 32
        %s153 = sadd.s32 %s151, %s152
        %s154 = smul.addr %s153, 4
        %s155 = scalar_lea.vmem %s0, %s154
        %s156 = smul.u32 8, %s17
      $region28: #{cnn2d_forward.4} parent=23 // pred_fallthru
        _
    $region24: #{cnn2d_forward.4} parent=5 // pred_fallthru
      _
    %p157 = scmp.le.s32.totalorder 1, %s9
    %p158 = scmp.lt.s32.totalorder %s9, 3
    %p159 = pnand %p157, %p158
    %p160 = pneg %p159
    // Predicated region
    $region29: #{cnn2d_forward.4} parent=5 // pred_check
      _
    $region30: #{cnn2d_forward.4} parent=5 // pred_check_branch
      %162 = sbr.rel (%p159) target = $region32
    $region31: #{cnn2d_forward.4} parent=5 // pred_region
      %s163 = ssub.s32 %s9, 1
      %s164 = smul.u32 8, %s19
      %p165 = scmp.lt.s32.totalorder %s18, 1
      %s166 = scalar_select %p165, %s18, 1
      %p167 = scmp.lt.s32.totalorder %s164, 7
      %s168 = scalar_select %p167, %s164, 7
      %s169 = smul.addr %s166, 32
      %s170 = sadd.s32 %s168, %s169
      %s171 = smul.addr %s170, 4
      %s172 = scalar_lea.vmem %s0, %s171
      %p173 = pneg %p49
      %p174 = pneg %p46
      %p175 = pneg %p70
      %p176 = pneg %p67
      %p177 = pneg %p91
      %p178 = pneg %p88
      %p179 = pneg %p119
      %p180 = pneg %p116
      %s181 = smul.u32 8, %s19
      %p182 = scmp.lt.s32.totalorder %s18, 1
      %s183 = scalar_select %p182, %s18, 1
      %p184 = scmp.lt.s32.totalorder %s181, 7
      %s185 = scalar_select %p184, %s181, 7
      %s186 = smul.addr %s183, 8
      %s187 = sadd.s32 %s185, %s186
      %s188 = smul.addr %s187, 8
      %s189 = scalar_lea.vmem %s3, %s188
      %s190 = smul.u32 8, %s19
      %p191 = scmp.lt.s32.totalorder %s18, 1
      %s192 = scalar_select %p191, %s18, 1
      %p193 = scmp.lt.s32.totalorder %s190, 7
      %s194 = scalar_select %p193, %s190, 7
      %s195 = smul.addr %s192, 32
      %s196 = sadd.s32 %s194, %s195
      %s197 = smul.addr %s196, 4
      %s198 = scalar_lea.vmem %s0, %s197
      %s199 = smul.u32 8, %s19
      %s200 = smul.u32 8, %s19
      %p201 = scmp.lt.s32.totalorder %s18, 1
      %s202 = scalar_select %p201, %s18, 1
      %p203 = scmp.lt.s32.totalorder %s200, 7
      %s204 = scalar_select %p203, %s200, 7
      %s205 = smul.addr %s202, 8
      %s206 = sadd.s32 %s204, %s205
      %s207 = smul.addr %s206, 8
      %s208 = scalar_lea.vmem %s3, %s207
      %s209 = smul.u32 8, %s19
      %v211 = vld [vmem:[%s1] sm:$0xf]
      %v212 = vld [vmem:[%s1 + $0x4] sm:$0xf]
      %v213 = vld [vmem:[%s1 + $0x8] sm:$0xf]
      %v214 = vld [vmem:[%s1 + $0xc] sm:$0xf]
      %v215 = vld [vmem:[%s1 + $0x10] sm:$0x3]
      %v216 = vld [vmem:[%s2] sm:$0x1]
      %v217 = vld [vmem:[%s198] sm:$0xf]
      %v218 = vld [vmem:[%s198 + $0x4] sm:$0xf]
      %v219 = vld [vmem:[%s198 + $0x8] sm:$0xf]
      %v220 = vld [vmem:[%s198 + $0xc] sm:$0xf]
      %v221 = vld [vmem:[%s198 + $0x10] sm:$0xf]
      %v222 = vld [vmem:[%s198 + $0x14] sm:$0xf]
      %v223 = vld [vmem:[%s198 + $0x18] sm:$0xf]
      %v224 = vld [vmem:[%s198 + $0x1c] sm:$0xf]
      %v225 = vld [vmem:[%s198 + $0x20] sm:$0xf]
      %v226 = vld [vmem:[%s198 + $0x24] sm:$0xf]
      %v227 = vld [vmem:[%s198 + $0x28] sm:$0xf]
      %v228 = vld [vmem:[%s198 + $0x2c] sm:$0xf]
      %v229 = vld [vmem:[%s198 + $0x30] sm:$0xf]
      %v230 = vld [vmem:[%s198 + $0x34] sm:$0xf]
      %v231 = vld [vmem:[%s198 + $0x38] sm:$0xf]
      %v232 = vld [vmem:[%s198 + $0x3c] sm:$0xf]
      %v233 = vld [vmem:[%s198 + $0x40] sm:$0xf]
      %v234 = vld [vmem:[%s198 + $0x44] sm:$0xf]
      %v235 = vld [vmem:[%s198 + $0x48] sm:$0xf]
      %v236 = vld [vmem:[%s198 + $0x4c] sm:$0xf]
      %v237 = vld [vmem:[%s198 + $0x50] sm:$0xf]
      %v238 = vld [vmem:[%s198 + $0x54] sm:$0xf]
      %v239 = vld [vmem:[%s198 + $0x58] sm:$0xf]
      %v240 = vld [vmem:[%s198 + $0x5c] sm:$0xf]
      %v241 = vld [vmem:[%s198 + $0x60] sm:$0xf]
      %v242 = vld [vmem:[%s198 + $0x64] sm:$0xf]
      %v243 = vld [vmem:[%s198 + $0x68] sm:$0xf]
      %v244 = vld [vmem:[%s198 + $0x6c] sm:$0xf]
      %v245 = vld [vmem:[%s198 + $0x70] sm:$0xf]
      %v246 = vld [vmem:[%s198 + $0x74] sm:$0xf]
      %v247 = vld [vmem:[%s198 + $0x78] sm:$0xf]
      %v248 = vld [vmem:[%s198 + $0x7c] sm:$0xf]
      %v250 = vlaneseq
      %v251 = vshrl.u32 %v250, 7
      %v252 = vsub.s32 0, %v251
      %v253 = vrot.slane %v216, %v252
      %v287 = vunpack.c.l.b16 %v217
      %v288 = vunpack.c.l.b16 %v218
      %v289 = vunpack.c.l.b16 %v219
      %v290 = vunpack.c.l.b16 %v220
      %v291 = vunpack.c.l.b16 %v221
      %v292 = vunpack.c.l.b16 %v222
      %v293 = vunpack.c.l.b16 %v223
      %v294 = vunpack.c.l.b16 %v224
      %v295 = vunpack.c.l.b16 %v225
      %v296 = vunpack.c.l.b16 %v226
      %v297 = vunpack.c.l.b16 %v227
      %v298 = vunpack.c.l.b16 %v228
      %v299 = vunpack.c.l.b16 %v229
      %v300 = vunpack.c.l.b16 %v230
      %v301 = vunpack.c.l.b16 %v231
      %v302 = vunpack.c.l.b16 %v232
      %v303 = vunpack.c.l.b16 %v233
      %v304 = vunpack.c.l.b16 %v234
      %v305 = vunpack.c.l.b16 %v235
      %v306 = vunpack.c.l.b16 %v236
      %v307 = vunpack.c.l.b16 %v237
      %v308 = vunpack.c.l.b16 %v238
      %v309 = vunpack.c.l.b16 %v239
      %v310 = vunpack.c.l.b16 %v240
      %v311 = vunpack.c.l.b16 %v241
      %v312 = vunpack.c.l.b16 %v242
      %v313 = vunpack.c.l.b16 %v243
      %v314 = vunpack.c.l.b16 %v244
      %v315 = vunpack.c.l.b16 %v245
      %v316 = vunpack.c.l.b16 %v246
      %v317 = vunpack.c.l.b16 %v247
      %v318 = vunpack.c.l.b16 %v248
      %v319 = vpack.c.b16 %v288, %v287
      %v320 = vpack.c.b16 %v290, %v289
      %v321 = vpack.c.b16 %v292, %v291
      %v322 = vpack.c.b16 %v294, %v293
      %v323 = vpack.c.b16 %v296, %v295
      %v324 = vpack.c.b16 %v298, %v297
      %v325 = vpack.c.b16 %v300, %v299
      %v326 = vpack.c.b16 %v302, %v301
      %v327 = vpack.c.b16 %v304, %v303
      %v328 = vpack.c.b16 %v306, %v305
      %v329 = vpack.c.b16 %v308, %v307
      %v330 = vpack.c.b16 %v310, %v309
      %v331 = vpack.c.b16 %v312, %v311
      %v332 = vpack.c.b16 %v314, %v313
      %v333 = vpack.c.b16 %v316, %v315
      %v334 = vpack.c.b16 %v318, %v317
      %v340 = vunpack.c.l.b16 %v211
      %v341 = vunpack.c.l.b16 %v212
      %v342 = vunpack.c.l.b16 %v213
      %v343 = vunpack.c.l.b16 %v214
      %v344 = vunpack.c.l.b16 %v215
      %v345 = vpack.c.b16 %v341, %v340
      %v346 = vpack.c.b16 %v343, %v342
      %v347 = vpack.c.b16 %v344, %v344
      %vm350 = vcmask 293888
      %v352 = vsel %vm350, %v319, 0
      %v355 = vsel %vm350, %v320, 0
      %v358 = vsel %vm350, %v321, 0
      %v361 = vsel %vm350, %v322, 0
      %v364 = vsel %vm350, %v323, 0
      %v367 = vsel %vm350, %v324, 0
      %v370 = vsel %vm350, %v325, 0
      %v373 = vsel %vm350, %v326, 0
      %v376 = vsel %vm350, %v327, 0
      %v379 = vsel %vm350, %v328, 0
      %v382 = vsel %vm350, %v329, 0
      %v385 = vsel %vm350, %v330, 0
      %v388 = vsel %vm350, %v331, 0
      %v391 = vsel %vm350, %v332, 0
      %v394 = vsel %vm350, %v333, 0
      %v397 = vsel %vm350, %v334, 0
      %vm399 = vcmask 1041408
      %v401 = vsel %vm399, %v347, 0
      %403 = vmatprep.subr.bf16.mxu0 0
      %404 = vmatpush1.bf16.msra.mxu0 %v345
      %405 = vmatprep.subr.bf16.mxu0 0
      %406 = vmatpush1.bf16.msra.mxu0 %v346
      %407 = vmatprep.subr.bf16.mxu0 0
      %408 = vmatpush1.bf16.msra.mxu0 %v401
      %409 = vmatprep.subr.bf16.mxu0 0
      %410 = vmatpush1.bf16.msra.mxu0 0
      %411 = vmatprep.subr.bf16.mxu0 0
      %412 = vmatpush1.bf16.msra.mxu0 0
      %413 = vmatprep.subr.bf16.mxu0 0
      %414 = vmatpush1.bf16.msra.mxu0 0
      %415 = vmatprep.subr.bf16.mxu0 0
      %416 = vmatpush1.bf16.msra.mxu0 0
      %417 = vmatprep.subr.bf16.mxu0 0
      %418 = vmatpush1.bf16.msra.mxu0 0
      %419 = vmatprep.subr.bf16.mxu0 0
      %420 = vmatpush1.bf16.msra.mxu0 0
      %421 = vmatprep.subr.bf16.mxu0 0
      %422 = vmatpush1.bf16.msra.mxu0 0
      %423 = vmatprep.subr.bf16.mxu0 0
      %424 = vmatpush1.bf16.msra.mxu0 0
      %425 = vmatprep.subr.bf16.mxu0 0
      %426 = vmatpush1.bf16.msra.mxu0 0
      %427 = vmatprep.subr.bf16.mxu0 0
      %428 = vmatpush1.bf16.msra.mxu0 0
      %429 = vmatprep.subr.bf16.mxu0 0
      %430 = vmatpush1.bf16.msra.mxu0 0
      %431 = vmatprep.subr.bf16.mxu0 0
      %432 = vmatpush1.bf16.msra.mxu0 0
      %433 = vmatprep.subr.bf16.mxu0 0
      %434 = vmatpush1.bf16.msra.mxu0 0
      %435 = vmatprep.mubr.bf16.mxu0 0
      %436 = vmatmul.mubr.bf16.gmra.mrb[0].mxu0 %v352
      %v437 = vpop.f32.mrb[0].mxu0
      %v438 = vadd.f32 %v253, %v437
      %v439 = vpop.f32.mrb[0].mxu0
      %v440 = vpop.f32.mrb[0].mxu0
      %v441 = vadd.f32 %v253, %v440
      %v442 = vpop.f32.mrb[0].mxu0
      %443 = vmatprep.mubr.bf16.mxu0 0
      %444 = vmatmul.mubr.bf16.gmra.mrb[0].mxu0 %v355
      %v445 = vpop.f32.mrb[0].mxu0
      %v446 = vadd.f32 %v253, %v445
      %v447 = vpop.f32.mrb[0].mxu0
      %v448 = vpop.f32.mrb[0].mxu0
      %v449 = vadd.f32 %v253, %v448
      %v450 = vpop.f32.mrb[0].mxu0
      %451 = vmatprep.mubr.bf16.mxu0 0
      %452 = vmatmul.mubr.bf16.gmra.mrb[0].mxu0 %v358
      %v453 = vpop.f32.mrb[0].mxu0
      %v454 = vadd.f32 %v253, %v453
      %v455 = vpop.f32.mrb[0].mxu0
      %v456 = vpop.f32.mrb[0].mxu0
      %v457 = vadd.f32 %v253, %v456
      %v458 = vpop.f32.mrb[0].mxu0
      %459 = vmatprep.mubr.bf16.mxu0 0
      %460 = vmatmul.mubr.bf16.gmra.mrb[0].mxu0 %v361
      %v461 = vpop.f32.mrb[0].mxu0
      %v462 = vadd.f32 %v253, %v461
      %v463 = vpop.f32.mrb[0].mxu0
      %v464 = vpop.f32.mrb[0].mxu0
      %v465 = vadd.f32 %v253, %v464
      %v466 = vpop.f32.mrb[0].mxu0
      %467 = vmatprep.mubr.bf16.mxu0 0
      %468 = vmatmul.mubr.bf16.gmra.mrb[0].mxu0 %v364
      %v469 = vpop.f32.mrb[0].mxu0
      %v470 = vadd.f32 %v253, %v469
      %v471 = vpop.f32.mrb[0].mxu0
      %v472 = vpop.f32.mrb[0].mxu0
      %v473 = vadd.f32 %v253, %v472
      %v474 = vpop.f32.mrb[0].mxu0
      %475 = vmatprep.mubr.bf16.mxu0 0
      %476 = vmatmul.mubr.bf16.gmra.mrb[0].mxu0 %v367
      %v477 = vpop.f32.mrb[0].mxu0
      %v478 = vadd.f32 %v253, %v477
      %v479 = vpop.f32.mrb[0].mxu0
      %v480 = vpop.f32.mrb[0].mxu0
      %v481 = vadd.f32 %v253, %v480
      %v482 = vpop.f32.mrb[0].mxu0
      %483 = vmatprep.mubr.bf16.mxu0 0
      %484 = vmatmul.mubr.bf16.gmra.mrb[0].mxu0 %v370
      %v485 = vpop.f32.mrb[0].mxu0
      %v486 = vadd.f32 %v253, %v485
      %v487 = vpop.f32.mrb[0].mxu0
      %v488 = vpop.f32.mrb[0].mxu0
      %v489 = vadd.f32 %v253, %v488
      %v490 = vpop.f32.mrb[0].mxu0
      %491 = vmatprep.mubr.bf16.mxu0 0
      %492 = vmatmul.mubr.bf16.gmra.mrb[0].mxu0 %v373
      %v493 = vpop.f32.mrb[0].mxu0
      %v494 = vadd.f32 %v253, %v493
      %v495 = vpop.f32.mrb[0].mxu0
      %v496 = vpop.f32.mrb[0].mxu0
      %v497 = vadd.f32 %v253, %v496
      %v498 = vpop.f32.mrb[0].mxu0
      %499 = vmatprep.mubr.bf16.mxu0 0
      %500 = vmatmul.mubr.bf16.gmra.mrb[0].mxu0 %v376
      %v501 = vpop.f32.mrb[0].mxu0
      %v502 = vadd.f32 %v253, %v501
      %v503 = vpop.f32.mrb[0].mxu0
      %v504 = vpop.f32.mrb[0].mxu0
      %v505 = vadd.f32 %v253, %v504
      %v506 = vpop.f32.mrb[0].mxu0
      %507 = vmatprep.mubr.bf16.mxu0 0
      %508 = vmatmul.mubr.bf16.gmra.mrb[0].mxu0 %v379
      %v509 = vpop.f32.mrb[0].mxu0
      %v510 = vadd.f32 %v253, %v509
      %v511 = vpop.f32.mrb[0].mxu0
      %v512 = vpop.f32.mrb[0].mxu0
      %v513 = vadd.f32 %v253, %v512
      %v514 = vpop.f32.mrb[0].mxu0
      %515 = vmatprep.mubr.bf16.mxu0 0
      %516 = vmatmul.mubr.bf16.gmra.mrb[0].mxu0 %v382
      %v517 = vpop.f32.mrb[0].mxu0
      %v518 = vadd.f32 %v253, %v517
      %v519 = vpop.f32.mrb[0].mxu0
      %v520 = vpop.f32.mrb[0].mxu0
      %v521 = vadd.f32 %v253, %v520
      %v522 = vpop.f32.mrb[0].mxu0
      %523 = vmatprep.mubr.bf16.mxu0 0
      %524 = vmatmul.mubr.bf16.gmra.mrb[0].mxu0 %v385
      %v525 = vpop.f32.mrb[0].mxu0
      %v526 = vadd.f32 %v253, %v525
      %v527 = vpop.f32.mrb[0].mxu0
      %v528 = vpop.f32.mrb[0].mxu0
      %v529 = vadd.f32 %v253, %v528
      %v530 = vpop.f32.mrb[0].mxu0
      %531 = vmatprep.mubr.bf16.mxu0 0
      %532 = vmatmul.mubr.bf16.gmra.mrb[0].mxu0 %v388
      %v533 = vpop.f32.mrb[0].mxu0
      %v534 = vadd.f32 %v253, %v533
      %v535 = vpop.f32.mrb[0].mxu0
      %v536 = vpop.f32.mrb[0].mxu0
      %v537 = vadd.f32 %v253, %v536
      %v538 = vpop.f32.mrb[0].mxu0
      %539 = vmatprep.mubr.bf16.mxu0 0
      %540 = vmatmul.mubr.bf16.gmra.mrb[0].mxu0 %v391
      %v541 = vpop.f32.mrb[0].mxu0
      %v542 = vadd.f32 %v253, %v541
      %v543 = vpop.f32.mrb[0].mxu0
      %v544 = vpop.f32.mrb[0].mxu0
      %v545 = vadd.f32 %v253, %v544
      %v546 = vpop.f32.mrb[0].mxu0
      %547 = vmatprep.mubr.bf16.mxu0 0
      %548 = vmatmul.mubr.bf16.gmra.mrb[0].mxu0 %v394
      %v549 = vpop.f32.mrb[0].mxu0
      %v550 = vadd.f32 %v253, %v549
      %v551 = vpop.f32.mrb[0].mxu0
      %v552 = vpop.f32.mrb[0].mxu0
      %v553 = vadd.f32 %v253, %v552
      %v554 = vpop.f32.mrb[0].mxu0
      %555 = vmatprep.mubr.bf16.mxu0 0
      %556 = vmatmul.mubr.bf16.gmra.mrb[0].mxu0 %v397
      %v557 = vpop.f32.mrb[0].mxu0
      %v558 = vadd.f32 %v253, %v557
      %v559 = vpop.f32.mrb[0].mxu0
      %v560 = vpop.f32.mrb[0].mxu0
      %v561 = vadd.f32 %v253, %v560
      %v562 = vpop.f32.mrb[0].mxu0
      %563 = vdwg.mxu0
      %v564 = vmax.f32 %v438, 0.0
      %v565 = vmax.f32 %v441, 0.0
      %v566 = vmax.f32 %v446, 0.0
      %v567 = vmax.f32 %v449, 0.0
      %v568 = vmax.f32 %v454, 0.0
      %v569 = vmax.f32 %v457, 0.0
      %v570 = vmax.f32 %v462, 0.0
      %v571 = vmax.f32 %v465, 0.0
      %v572 = vmax.f32 %v470, 0.0
      %v573 = vmax.f32 %v473, 0.0
      %v574 = vmax.f32 %v478, 0.0
      %v575 = vmax.f32 %v481, 0.0
      %v576 = vmax.f32 %v486, 0.0
      %v577 = vmax.f32 %v489, 0.0
      %v578 = vmax.f32 %v494, 0.0
      %v579 = vmax.f32 %v497, 0.0
      %v580 = vmax.f32 %v502, 0.0
      %v581 = vmax.f32 %v505, 0.0
      %v582 = vmax.f32 %v510, 0.0
      %v583 = vmax.f32 %v513, 0.0
      %v584 = vmax.f32 %v518, 0.0
      %v585 = vmax.f32 %v521, 0.0
      %v586 = vmax.f32 %v526, 0.0
      %v587 = vmax.f32 %v529, 0.0
      %v588 = vmax.f32 %v534, 0.0
      %v589 = vmax.f32 %v537, 0.0
      %v590 = vmax.f32 %v542, 0.0
      %v591 = vmax.f32 %v545, 0.0
      %v592 = vmax.f32 %v550, 0.0
      %v593 = vmax.f32 %v553, 0.0
      %v594 = vmax.f32 %v558, 0.0
      %v595 = vmax.f32 %v561, 0.0
      %v596 = vmax.f32 %v564, %v572
      %v597 = vmax.f32 %v565, %v573
      %v598 = vmax.f32 %v566, %v574
      %v599 = vmax.f32 %v567, %v575
      %v600 = vmax.f32 %v568, %v576
      %v601 = vmax.f32 %v569, %v577
      %v602 = vmax.f32 %v570, %v578
      %v603 = vmax.f32 %v571, %v579
      %v604 = vmax.f32 %v580, %v588
      %v605 = vmax.f32 %v581, %v589
      %v606 = vmax.f32 %v582, %v590
      %v607 = vmax.f32 %v583, %v591
      %v608 = vmax.f32 %v584, %v592
      %v609 = vmax.f32 %v585, %v593
      %v610 = vmax.f32 %v586, %v594
      %v611 = vmax.f32 %v587, %v595
      %v612 = vmax.f32 %v596, %v604
      %v613 = vmax.f32 %v597, %v605
      %v614 = vmax.f32 %v598, %v606
      %v615 = vmax.f32 %v599, %v607
      %v616 = vmax.f32 %v600, %v608
      %v617 = vmax.f32 %v601, %v609
      %v618 = vmax.f32 %v602, %v610
      %v619 = vmax.f32 %v603, %v611
      %vm620 = vcmask 64512
      %621 = vst.msk [vmem:[%s208] sm:$0xff] %vm620, %v612
      %622 = vst.msk [vmem:[%s208 + $0x8] sm:$0xff] %vm620, %v613
      %623 = vst.msk [vmem:[%s208 + $0x10] sm:$0xff] %vm620, %v614
      %624 = vst.msk [vmem:[%s208 + $0x18] sm:$0xff] %vm620, %v615
      %625 = vst.msk [vmem:[%s208 + $0x20] sm:$0xff] %vm620, %v616
      %626 = vst.msk [vmem:[%s208 + $0x28] sm:$0xff] %vm620, %v617
      %627 = vst.msk [vmem:[%s208 + $0x30] sm:$0xff] %vm620, %v618
      %628 = vst.msk [vmem:[%s208 + $0x38] sm:$0xff] %vm620, %v619
      %s629 = smul.u32 8, %s19
      %p630 = scmp.lt.s32.totalorder %s18, 1
      %s631 = scalar_select %p630, %s18, 1
      %p632 = scmp.lt.s32.totalorder %s629, 7
      %s633 = scalar_select %p632, %s629, 7
      %s634 = smul.addr %s631, 8
      %s635 = sadd.s32 %s633, %s634
      %s636 = smul.addr %s635, 8
      %s637 = scalar_lea.vmem %s3, %s636
      // Predicated region
      $region33: #{cnn2d_forward.4} parent=31 // pred_check
        %p638 = pneg %p116
      $region34: #{cnn2d_forward.4} parent=31 // pred_check_branch
        %640 = sbr.rel (%p638) target = $region36
      $region35: #{cnn2d_forward.4} parent=31 // pred_region
        %s641 = smul.u32 8, %s19
      $region36: #{cnn2d_forward.4} parent=31 // pred_fallthru
        _
    $region32: #{cnn2d_forward.4} parent=5 // pred_fallthru
      _
    %p642 = scmp.le.s32.totalorder 2, %s9
    // Predicated region
    $region37: #{cnn2d_forward.4} parent=5 // pred_check
      %p643 = pneg %p642
    $region38: #{cnn2d_forward.4} parent=5 // pred_check_branch
      %645 = sbr.rel (%p643) target = $region40
    $region39: #{cnn2d_forward.4} parent=5 // pred_region
      %s646 = ssub.s32 %s9, 2
      // Predicated region
      $region41: #{cnn2d_forward.4} parent=39 // pred_check
        %p647 = pneg %p122
      $region42: #{cnn2d_forward.4} parent=39 // pred_check_branch
        %649 = sbr.rel (%p647) target = $region44
      $region43: #{cnn2d_forward.4} parent=39 // pred_region
        %s650 = smul.u32 8, %s21
        %p651 = scmp.lt.s32.totalorder %s20, 1
        %s652 = scalar_select %p651, %s20, 1
        %p653 = scmp.lt.s32.totalorder %s650, 7
        %s654 = scalar_select %p653, %s650, 7
        %s655 = smul.addr %s652, 8
        %s656 = sadd.s32 %s654, %s655
        %s657 = smul.addr %s656, 8
        %s658 = scalar_lea.vmem %s3, %s657
      $region44: #{cnn2d_forward.4} parent=39 // pred_fallthru
        _
    $region40: #{cnn2d_forward.4} parent=5 // pred_fallthru
      _
  $region6: #{cnn2d_forward.4} parent=0 // loop_footer
    %s13 = sadd.s32 1, %s9
  $region7: #{cnn2d_forward.4} parent=0 // loop_footer_branch
    %8 = sbr.rel target = $region3
  $region8: #{cnn2d_forward.4} parent=0 // loop_exit
    _

// kernel: cnn2d_forward.5
$region0: #{cnn2d_forward.5}
  #allocation0 [shape = 'u32[]', space=smem, size = 0x4, offset = 0x4, fixed_abs, tag = 'smem constant byte address 0x4 - core index']
  #allocation1 [shape = 'u32[144,128]{1,0:T(1,128)}', space=vmem, size = 0x12000, scoped, tag = 'internal scratch']
  %s0 = inlined_call_operand.vmem [shape: bf16[2,4,16,72], index: 0, kind: input, shape index: {}]
  %s1 = inlined_call_operand.vmem [shape: bf16[72,16], index: 1, kind: input, shape index: {}]
  %s2 = inlined_call_operand.vmem [shape: f32[1,16], index: 2, kind: input, shape index: {}]
  %s3 = inlined_call_operand.vmem [shape: f32[2,16,16], index: 3, kind: output, shape index: {}]
  %s4 = sld [smem:[#allocation0]]
  $region45: #{cnn2d_forward.5} parent=0
    _
  %s6 = ssub.s32 1, %s4
  %s7 = scalar_select 0, %s6, %s4
  loop: start=0, step=1, limit=4
  $region2: #{cnn2d_forward.5} parent=0 // loop_pre_header
    _
  $region3: #{cnn2d_forward.5} parent=0 // loop_header
    %s9 = sphi 0, %s13
    %p10 = scmp.ge.s32.totalorder %s9, 4
    %s16 = sphi 0, %s28
    %s17 = sphi 0, %s24
    %s18 = sphi 0, %s16
    %s19 = sphi 0, %s17
    %s20 = sphi 0, %s18
    %s21 = sphi 0, %s19
    %s33 = sphi 0, %s35
    %s36 = sphi 0, %s33
    %s37 = sphi 0, %s36
    %s53 = sphi 0, %s37
    %s57 = sphi 0, %s57
    %s59 = sphi 0, %s57
    %s60 = sphi 0, %s59
    %s74 = sphi 0, %s60
    %s78 = sphi 0, %s78
    %s80 = sphi 0, %s78
    %s81 = sphi 0, %s80
    %s95 = sphi 0, %s81
    %s103 = sphi 0, %s105
    %s106 = sphi 0, %s103
    %s107 = sphi 0, %s106
    %s123 = sphi 0, %s107
  $region4: #{cnn2d_forward.5} parent=0 // loop_header_branch
    %12 = sbr.rel (%p10) target = $region8
  $region5: #{cnn2d_forward.5} parent=0 // loop_body
    %s14 = ssub.s32 %s9, 1
    %s15 = ssub.s32 %s9, 2
    %s22 = sadd.s32 1, %s17
    %p23 = scmp.ge.s32.totalorder %s22, 1
    %s24 = scalar_select %p23, 0, %s22
    %s25 = sadd.s32 1, %s16
    %s26 = scalar_select %p23, %s25, %s16
    %p27 = scmp.ge.s32.totalorder %s26, 2
    %s28 = scalar_select %p27, 0, %s26
    %s29 = ssub.s32 %s16, %s28
    %s30 = ssub.s32 %s17, %s24
    %s31 = sor.u32 %s29, %s30
    %p32 = scmp.eq.s32.totalorder %s31, 0
    %s34 = sadd.s32 %s33, 1
    %s35 = scalar_select %p32, %s33, %s34
    %p38 = pneg %p32
    %p39 = scmp.eq.s32.totalorder %s9, 1
    %p40 = por %p38, %p39
    %p41 = scmp.ne.s32.totalorder %s33, %s36
    %p42 = scmp.eq.s32.totalorder %s9, 0
    %p43 = por %p41, %p42
    %p44 = scmp.ne.s32.totalorder %s33, %s36
    %p45 = scmp.eq.s32.totalorder %s14, 1
    %p46 = por %p44, %p45
    %p47 = scmp.ne.s32.totalorder %s36, %s37
    %p48 = scmp.eq.s32.totalorder %s14, 0
    %p49 = por %p47, %p48
    %p50 = scmp.ne.s32.totalorder %s36, %s37
    %p51 = scmp.eq.s32.totalorder %s15, 1
    %p52 = por %p50, %p51
    %p54 = scmp.ne.s32.totalorder %s37, %s53
    %p55 = scmp.eq.s32.totalorder %s15, 0
    %p56 = por %p54, %p55
    %s58 = sadd.s32 %s57, 1
    %p61 = scmp.eq.s32.totalorder %s9, 1
    %p62 = scmp.ne.s32.totalorder %s57, %s59
    %p63 = scmp.eq.s32.totalorder %s9, 0
    %p64 = por %p62, %p63
    %p65 = scmp.ne.s32.totalorder %s57, %s59
    %p66 = scmp.eq.s32.totalorder %s14, 1
    %p67 = por %p65, %p66
    %p68 = scmp.ne.s32.totalorder %s59, %s60
    %p69 = scmp.eq.s32.totalorder %s14, 0
    %p70 = por %p68, %p69
    %p71 = scmp.ne.s32.totalorder %s59, %s60
    %p72 = scmp.eq.s32.totalorder %s15, 1
    %p73 = por %p71, %p72
    %p75 = scmp.ne.s32.totalorder %s60, %s74
    %p76 = scmp.eq.s32.totalorder %s15, 0
    %p77 = por %p75, %p76
    %s79 = sadd.s32 %s78, 1
    %p82 = scmp.eq.s32.totalorder %s9, 1
    %p83 = scmp.ne.s32.totalorder %s78, %s80
    %p84 = scmp.eq.s32.totalorder %s9, 0
    %p85 = por %p83, %p84
    %p86 = scmp.ne.s32.totalorder %s78, %s80
    %p87 = scmp.eq.s32.totalorder %s14, 1
    %p88 = por %p86, %p87
    %p89 = scmp.ne.s32.totalorder %s80, %s81
    %p90 = scmp.eq.s32.totalorder %s14, 0
    %p91 = por %p89, %p90
    %p92 = scmp.ne.s32.totalorder %s80, %s81
    %p93 = scmp.eq.s32.totalorder %s15, 1
    %p94 = por %p92, %p93
    %p96 = scmp.ne.s32.totalorder %s81, %s95
    %p97 = scmp.eq.s32.totalorder %s15, 0
    %p98 = por %p96, %p97
    %s99 = ssub.s32 %s16, %s28
    %s100 = ssub.s32 %s17, %s24
    %s101 = sor.u32 %s99, %s100
    %p102 = scmp.eq.s32.totalorder %s101, 0
    %s104 = sadd.s32 %s103, 1
    %s105 = scalar_select %p102, %s103, %s104
    %p108 = pneg %p102
    %p109 = scmp.eq.s32.totalorder %s9, 1
    %p110 = por %p108, %p109
    %p111 = scmp.ne.s32.totalorder %s103, %s106
    %p112 = scmp.eq.s32.totalorder %s9, 0
    %p113 = por %p111, %p112
    %p114 = scmp.ne.s32.totalorder %s103, %s106
    %p115 = scmp.eq.s32.totalorder %s14, 1
    %p116 = por %p114, %p115
    %p117 = scmp.ne.s32.totalorder %s106, %s107
    %p118 = scmp.eq.s32.totalorder %s14, 0
    %p119 = por %p117, %p118
    %p120 = scmp.ne.s32.totalorder %s106, %s107
    %p121 = scmp.eq.s32.totalorder %s15, 1
    %p122 = por %p120, %p121
    %p124 = scmp.ne.s32.totalorder %s107, %s123
    %p125 = scmp.eq.s32.totalorder %s15, 0
    %p126 = por %p124, %p125
    %p127 = scmp.le.s32.totalorder 1, %s9
    %p128 = scmp.lt.s32.totalorder %s9, 3
    %p129 = pnand %p127, %p128
    %p130 = pneg %p129
    // Predicated region
    $region9: #{cnn2d_forward.5} parent=5 // pred_check
      _
    $region10: #{cnn2d_forward.5} parent=5 // pred_check_branch
      %132 = sbr.rel (%p129) target = $region12
    $region11: #{cnn2d_forward.5} parent=5 // pred_region
      %s133 = ssub.s32 %s9, 1
      // Predicated region
      $region13: #{cnn2d_forward.5} parent=11 // pred_check
        %p134 = pneg %p70
      $region14: #{cnn2d_forward.5} parent=11 // pred_check_branch
        %136 = sbr.rel (%p134) target = $region16
      $region15: #{cnn2d_forward.5} parent=11 // pred_region
        _
      $region16: #{cnn2d_forward.5} parent=11 // pred_fallthru
        _
      // Predicated region
      $region17: #{cnn2d_forward.5} parent=11 // pred_check
        %p137 = pneg %p91
      $region18: #{cnn2d_forward.5} parent=11 // pred_check_branch
        %139 = sbr.rel (%p137) target = $region20
      $region19: #{cnn2d_forward.5} parent=11 // pred_region
        _
      $region20: #{cnn2d_forward.5} parent=11 // pred_fallthru
        _
    $region12: #{cnn2d_forward.5} parent=5 // pred_fallthru
      _
    %p140 = scmp.lt.s32.totalorder %s9, 2
    // Predicated region
    $region21: #{cnn2d_forward.5} parent=5 // pred_check
      %p141 = pneg %p140
    $region22: #{cnn2d_forward.5} parent=5 // pred_check_branch
      %143 = sbr.rel (%p141) target = $region24
    $region23: #{cnn2d_forward.5} parent=5 // pred_region
      // Predicated region
      $region25: #{cnn2d_forward.5} parent=23 // pred_check
        %p144 = pneg %p43
      $region26: #{cnn2d_forward.5} parent=23 // pred_check_branch
        %146 = sbr.rel (%p144) target = $region28
      $region27: #{cnn2d_forward.5} parent=23 // pred_region
        %s147 = smul.u32 2, %s17
        %p148 = scmp.lt.s32.totalorder %s16, 1
        %s149 = scalar_select %p148, %s16, 1
        %p150 = scmp.lt.s32.totalorder %s147, 1
        %s151 = scalar_select %p150, %s147, 1
        %s152 = smul.addr %s149, 8
        %s153 = sadd.s32 %s151, %s152
        %s154 = smul.addr %s153, 4
        %s155 = scalar_lea.vmem %s0, %s154
        %s156 = smul.u32 2, %s17
      $region28: #{cnn2d_forward.5} parent=23 // pred_fallthru
        _
    $region24: #{cnn2d_forward.5} parent=5 // pred_fallthru
      _
    %p157 = scmp.le.s32.totalorder 1, %s9
    %p158 = scmp.lt.s32.totalorder %s9, 3
    %p159 = pnand %p157, %p158
    %p160 = pneg %p159
    // Predicated region
    $region29: #{cnn2d_forward.5} parent=5 // pred_check
      _
    $region30: #{cnn2d_forward.5} parent=5 // pred_check_branch
      %162 = sbr.rel (%p159) target = $region32
    $region31: #{cnn2d_forward.5} parent=5 // pred_region
      %s163 = ssub.s32 %s9, 1
      %s164 = smul.u32 2, %s19
      %p165 = scmp.lt.s32.totalorder %s18, 1
      %s166 = scalar_select %p165, %s18, 1
      %p167 = scmp.lt.s32.totalorder %s164, 1
      %s168 = scalar_select %p167, %s164, 1
      %s169 = smul.addr %s166, 8
      %s170 = sadd.s32 %s168, %s169
      %s171 = smul.addr %s170, 4
      %s172 = scalar_lea.vmem %s0, %s171
      %p173 = pneg %p49
      %p174 = pneg %p46
      %p175 = pneg %p70
      %p176 = pneg %p67
      %p177 = pneg %p91
      %p178 = pneg %p88
      %p179 = pneg %p119
      %p180 = pneg %p116
      %s181 = smul.u32 2, %s19
      %p182 = scmp.lt.s32.totalorder %s18, 1
      %s183 = scalar_select %p182, %s18, 1
      %p184 = scmp.lt.s32.totalorder %s181, 1
      %s185 = scalar_select %p184, %s181, 1
      %s186 = smul.addr %s183, 2
      %s187 = sadd.s32 %s185, %s186
      %s188 = smul.addr %s187, 8
      %s189 = scalar_lea.vmem %s3, %s188
      %s190 = smul.u32 2, %s19
      %p191 = scmp.lt.s32.totalorder %s18, 1
      %s192 = scalar_select %p191, %s18, 1
      %p193 = scmp.lt.s32.totalorder %s190, 1
      %s194 = scalar_select %p193, %s190, 1
      %s195 = smul.addr %s192, 8
      %s196 = sadd.s32 %s194, %s195
      %s197 = smul.addr %s196, 4
      %s198 = scalar_lea.vmem %s0, %s197
      %s199 = smul.u32 2, %s19
      %s200 = smul.u32 2, %s19
      %p201 = scmp.lt.s32.totalorder %s18, 1
      %s202 = scalar_select %p201, %s18, 1
      %p203 = scmp.lt.s32.totalorder %s200, 1
      %s204 = scalar_select %p203, %s200, 1
      %s205 = smul.addr %s202, 2
      %s206 = sadd.s32 %s204, %s205
      %s207 = smul.addr %s206, 8
      %s208 = scalar_lea.vmem %s3, %s207
      %s209 = smul.u32 2, %s19
      %v211 = vld [vmem:[%s1] sm:$0xf]
      %v212 = vld [vmem:[%s1 + $0x4] sm:$0xf]
      %v213 = vld [vmem:[%s1 + $0x8] sm:$0xf]
      %v214 = vld [vmem:[%s1 + $0xc] sm:$0xf]
      %v215 = vld [vmem:[%s1 + $0x10] sm:$0xf]
      %v216 = vld [vmem:[%s1 + $0x14] sm:$0xf]
      %v217 = vld [vmem:[%s1 + $0x18] sm:$0xf]
      %v218 = vld [vmem:[%s1 + $0x1c] sm:$0xf]
      %v219 = vld [vmem:[%s1 + $0x20] sm:$0xf]
      %v220 = vld [vmem:[%s2] sm:$0x1]
      %v221 = vld [vmem:[%s198] sm:$0xf]
      %v222 = vld [vmem:[%s198 + $0x4] sm:$0xf]
      %v223 = vld [vmem:[%s198 + $0x8] sm:$0xf]
      %v224 = vld [vmem:[%s198 + $0xc] sm:$0xf]
      %v225 = vld [vmem:[%s198 + $0x10] sm:$0xf]
      %v226 = vld [vmem:[%s198 + $0x14] sm:$0xf]
      %v227 = vld [vmem:[%s198 + $0x18] sm:$0xf]
      %v228 = vld [vmem:[%s198 + $0x1c] sm:$0xf]
      %v230 = vlaneseq
      %v231 = vshrl.u32 %v230, 7
      %v232 = vsub.s32 0, %v231
      %v233 = vrot.slane %v220, %v232
      %v243 = vunpack.c.l.b16 %v221
      %v244 = vunpack.c.l.b16 %v222
      %v245 = vunpack.c.l.b16 %v223
      %v246 = vunpack.c.l.b16 %v224
      %v247 = vunpack.c.l.b16 %v225
      %v248 = vunpack.c.l.b16 %v226
      %v249 = vunpack.c.l.b16 %v227
      %v250 = vunpack.c.l.b16 %v228
      %v251 = vpack.c.b16 %v244, %v243
      %v252 = vpack.c.b16 %v246, %v245
      %v253 = vpack.c.b16 %v248, %v247
      %v254 = vpack.c.b16 %v250, %v249
      %v264 = vunpack.c.l.b16 %v211
      %v265 = vunpack.c.l.b16 %v212
      %v266 = vunpack.c.l.b16 %v213
      %v267 = vunpack.c.l.b16 %v214
      %v268 = vunpack.c.l.b16 %v215
      %v269 = vunpack.c.l.b16 %v216
      %v270 = vunpack.c.l.b16 %v217
      %v271 = vunpack.c.l.b16 %v218
      %v272 = vunpack.c.l.b16 %v219
      %v273 = vpack.c.b16 %v265, %v264
      %v274 = vpack.c.b16 %v267, %v266
      %v275 = vpack.c.b16 %v269, %v268
      %v276 = vpack.c.b16 %v271, %v270
      %v277 = vpack.c.b16 %v272, %v272
      %vm282 = vcmask 588800
      %v284 = vsel %vm282, %v251, 0
      %v287 = vsel %vm282, %v252, 0
      %v290 = vsel %vm282, %v253, 0
      %v293 = vsel %vm282, %v254, 0
      %vm295 = vcmask 1043456
      %v297 = vsel %vm295, %v277, 0
      %299 = vmatprep.subr.bf16.mxu0 0
      %300 = vmatpush1.bf16.msra.mxu0 %v273
      %301 = vmatprep.subr.bf16.mxu0 0
      %302 = vmatpush1.bf16.msra.mxu0 %v274
      %303 = vmatprep.subr.bf16.mxu0 0
      %304 = vmatpush1.bf16.msra.mxu0 %v275
      %305 = vmatprep.subr.bf16.mxu0 0
      %306 = vmatpush1.bf16.msra.mxu0 %v276
      %307 = vmatprep.subr.bf16.mxu0 0
      %308 = vmatpush1.bf16.msra.mxu0 %v297
      %309 = vmatprep.subr.bf16.mxu0 0
      %310 = vmatpush1.bf16.msra.mxu0 0
      %311 = vmatprep.subr.bf16.mxu0 0
      %312 = vmatpush1.bf16.msra.mxu0 0
      %313 = vmatprep.subr.bf16.mxu0 0
      %314 = vmatpush1.bf16.msra.mxu0 0
      %315 = vmatprep.subr.bf16.mxu0 0
      %316 = vmatpush1.bf16.msra.mxu0 0
      %317 = vmatprep.subr.bf16.mxu0 0
      %318 = vmatpush1.bf16.msra.mxu0 0
      %319 = vmatprep.subr.bf16.mxu0 0
      %320 = vmatpush1.bf16.msra.mxu0 0
      %321 = vmatprep.subr.bf16.mxu0 0
      %322 = vmatpush1.bf16.msra.mxu0 0
      %323 = vmatprep.subr.bf16.mxu0 0
      %324 = vmatpush1.bf16.msra.mxu0 0
      %325 = vmatprep.subr.bf16.mxu0 0
      %326 = vmatpush1.bf16.msra.mxu0 0
      %327 = vmatprep.subr.bf16.mxu0 0
      %328 = vmatpush1.bf16.msra.mxu0 0
      %329 = vmatprep.subr.bf16.mxu0 0
      %330 = vmatpush1.bf16.msra.mxu0 0
      %331 = vmatprep.mubr.bf16.mxu0 0
      %332 = vmatmul.mubr.bf16.gmra.mrb[0].mxu0 %v284
      %v333 = vpop.f32.mrb[0].mxu0
      %v334 = vadd.f32 %v233, %v333
      %v335 = vpop.f32.mrb[0].mxu0
      %v336 = vpop.f32.mrb[0].mxu0
      %v337 = vadd.f32 %v233, %v336
      %v338 = vpop.f32.mrb[0].mxu0
      %339 = vmatprep.mubr.bf16.mxu0 0
      %340 = vmatmul.mubr.bf16.gmra.mrb[0].mxu0 %v287
      %v341 = vpop.f32.mrb[0].mxu0
      %v342 = vadd.f32 %v233, %v341
      %v343 = vpop.f32.mrb[0].mxu0
      %v344 = vpop.f32.mrb[0].mxu0
      %v345 = vadd.f32 %v233, %v344
      %v346 = vpop.f32.mrb[0].mxu0
      %347 = vmatprep.mubr.bf16.mxu0 0
      %348 = vmatmul.mubr.bf16.gmra.mrb[0].mxu0 %v290
      %v349 = vpop.f32.mrb[0].mxu0
      %v350 = vadd.f32 %v233, %v349
      %v351 = vpop.f32.mrb[0].mxu0
      %v352 = vpop.f32.mrb[0].mxu0
      %v353 = vadd.f32 %v233, %v352
      %v354 = vpop.f32.mrb[0].mxu0
      %355 = vmatprep.mubr.bf16.mxu0 0
      %356 = vmatmul.mubr.bf16.gmra.mrb[0].mxu0 %v293
      %v357 = vpop.f32.mrb[0].mxu0
      %v358 = vadd.f32 %v233, %v357
      %v359 = vpop.f32.mrb[0].mxu0
      %v360 = vpop.f32.mrb[0].mxu0
      %v361 = vadd.f32 %v233, %v360
      %v362 = vpop.f32.mrb[0].mxu0
      %363 = vdwg.mxu0
      %v364 = vmax.f32 %v334, 0.0
      %v365 = vmax.f32 %v337, 0.0
      %v366 = vmax.f32 %v342, 0.0
      %v367 = vmax.f32 %v345, 0.0
      %v368 = vmax.f32 %v350, 0.0
      %v369 = vmax.f32 %v353, 0.0
      %v370 = vmax.f32 %v358, 0.0
      %v371 = vmax.f32 %v361, 0.0
      %v372 = vmax.f32 %v364, %v366
      %v373 = vmax.f32 %v365, %v367
      %v374 = vmax.f32 %v368, %v370
      %v375 = vmax.f32 %v369, %v371
      %v376 = vmax.f32 %v372, %v374
      %v377 = vmax.f32 %v373, %v375
      %vm378 = vcmask 130048
      %379 = vst.msk [vmem:[%s208] sm:$0xff] %vm378, %v376
      %380 = vst.msk [vmem:[%s208 + $0x8] sm:$0xff] %vm378, %v377
      %s381 = smul.u32 2, %s19
      %p382 = scmp.lt.s32.totalorder %s18, 1
      %s383 = scalar_select %p382, %s18, 1
      %p384 = scmp.lt.s32.totalorder %s381, 1
      %s385 = scalar_select %p384, %s381, 1
      %s386 = smul.addr %s383, 2
      %s387 = sadd.s32 %s385, %s386
      %s388 = smul.addr %s387, 8
      %s389 = scalar_lea.vmem %s3, %s388
      // Predicated region
      $region33: #{cnn2d_forward.5} parent=31 // pred_check
        %p390 = pneg %p116
      $region34: #{cnn2d_forward.5} parent=31 // pred_check_branch
        %392 = sbr.rel (%p390) target = $region36
      $region35: #{cnn2d_forward.5} parent=31 // pred_region
        %s393 = smul.u32 2, %s19
      $region36: #{cnn2d_forward.5} parent=31 // pred_fallthru
        _
    $region32: #{cnn2d_forward.5} parent=5 // pred_fallthru
      _
    %p394 = scmp.le.s32.totalorder 2, %s9
    // Predicated region
    $region37: #{cnn2d_forward.5} parent=5 // pred_check
      %p395 = pneg %p394
    $region38: #{cnn2d_forward.5} parent=5 // pred_check_branch
      %397 = sbr.rel (%p395) target = $region40
    $region39: #{cnn2d_forward.5} parent=5 // pred_region
      %s398 = ssub.s32 %s9, 2
      // Predicated region
      $region41: #{cnn2d_forward.5} parent=39 // pred_check
        %p399 = pneg %p122
      $region42: #{cnn2d_forward.5} parent=39 // pred_check_branch
        %401 = sbr.rel (%p399) target = $region44
      $region43: #{cnn2d_forward.5} parent=39 // pred_region
        %s402 = smul.u32 2, %s21
        %p403 = scmp.lt.s32.totalorder %s20, 1
        %s404 = scalar_select %p403, %s20, 1
        %p405 = scmp.lt.s32.totalorder %s402, 1
        %s406 = scalar_select %p405, %s402, 1
        %s407 = smul.addr %s404, 2
        %s408 = sadd.s32 %s406, %s407
        %s409 = smul.addr %s408, 8
        %s410 = scalar_lea.vmem %s3, %s409
      $region44: #{cnn2d_forward.5} parent=39 // pred_fallthru
        _
    $region40: #{cnn2d_forward.5} parent=5 // pred_fallthru
      _
  $region6: #{cnn2d_forward.5} parent=0 // loop_footer
    %s13 = sadd.s32 1, %s9
  $region7: #{cnn2d_forward.5} parent=0 // loop_footer_branch
    %8 = sbr.rel target = $region3
  $region8: #{cnn2d_forward.5} parent=0 // loop_exit
    _

// kernel: cnn2d_forward.6
$region0: #{cnn2d_forward.6}
  #allocation0 [shape = 'u32[]', space=smem, size = 0x4, offset = 0x4, fixed_abs, tag = 'smem constant byte address 0x4 - core index']
  #allocation1 [shape = 'u32[144,128]{1,0:T(1,128)}', space=vmem, size = 0x12000, scoped, tag = 'internal scratch']
  #allocation2 [shape = 'f32[2,32]{1,0:T(2,128)}', space=vmem, size = 0x400, scoped, tag = 'scratch operand']
  %s0 = inlined_call_operand.vmem [shape: bf16[2,256], index: 0, kind: input, shape index: {}]
  %s1 = inlined_call_operand.vmem [shape: bf16[256,32], index: 1, kind: input, shape index: {}]
  %s2 = inlined_call_operand.vmem [shape: f32[1,32], index: 2, kind: input, shape index: {}]
  %s3 = inlined_call_operand.vmem [shape: f32[2,32], index: 3, kind: output, shape index: {}]
  %s4 = sld [smem:[#allocation0]]
  $region30: #{cnn2d_forward.6} parent=0
    _
  %s6 = ssub.s32 1, %s4
  %s7 = scalar_select 0, %s6, %s4
  // Predicated region
  $region2: #{cnn2d_forward.6} parent=0 // pred_check
    _
  $region3: #{cnn2d_forward.6} parent=0 // pred_check_branch
    %9 = sbr.rel (0) target = $region5
  $region4: #{cnn2d_forward.6} parent=0 // pred_region
    _
  $region5: #{cnn2d_forward.6} parent=0 // pred_fallthru
    _
  // Predicated region
  $region6: #{cnn2d_forward.6} parent=0 // pred_check
    _
  $region7: #{cnn2d_forward.6} parent=0 // pred_check_branch
    %11 = sbr.rel (0) target = $region9
  $region8: #{cnn2d_forward.6} parent=0 // pred_region
    _
  $region9: #{cnn2d_forward.6} parent=0 // pred_fallthru
    _
  // Predicated region
  $region10: #{cnn2d_forward.6} parent=0 // pred_check
    _
  $region11: #{cnn2d_forward.6} parent=0 // pred_check_branch
    %13 = sbr.rel (0) target = $region13
  $region12: #{cnn2d_forward.6} parent=0 // pred_region
    _
  $region13: #{cnn2d_forward.6} parent=0 // pred_fallthru
    _
  %p15 = scmp.eq.s32.totalorder 0, 0
  // Predicated region
  $region14: #{cnn2d_forward.6} parent=0 // pred_check
    %p16 = pneg %p15
  $region15: #{cnn2d_forward.6} parent=0 // pred_check_branch
    %18 = sbr.rel (%p16) target = $region17
  $region16: #{cnn2d_forward.6} parent=0 // pred_region
    %vm19 = vcmask 254976
    %20 = vst.msk [vmem:[#allocation2] sm:$0x3] %vm19, 0.0
  $region17: #{cnn2d_forward.6} parent=0 // pred_fallthru
    _
  %v21 = vld [vmem:[#allocation2] sm:$0x3]
  %v22 = vld [vmem:[%s0] sm:$0x3]
  %v23 = vld [vmem:[%s1] sm:$0xf]
  %v24 = vld [vmem:[%s1 + $0x4] sm:$0xf]
  %v25 = vld [vmem:[%s1 + $0x8] sm:$0xf]
  %v26 = vld [vmem:[%s1 + $0xc] sm:$0xf]
  %v27 = vld [vmem:[%s1 + $0x10] sm:$0xf]
  %v28 = vld [vmem:[%s1 + $0x14] sm:$0xf]
  %v29 = vld [vmem:[%s1 + $0x18] sm:$0xf]
  %v30 = vld [vmem:[%s1 + $0x1c] sm:$0xf]
  %v31 = vld [vmem:[%s1 + $0x20] sm:$0xf]
  %v32 = vld [vmem:[%s1 + $0x24] sm:$0xf]
  %v33 = vld [vmem:[%s1 + $0x28] sm:$0xf]
  %v34 = vld [vmem:[%s1 + $0x2c] sm:$0xf]
  %v35 = vld [vmem:[%s1 + $0x30] sm:$0xf]
  %v36 = vld [vmem:[%s1 + $0x34] sm:$0xf]
  %v37 = vld [vmem:[%s1 + $0x38] sm:$0xf]
  %v38 = vld [vmem:[%s1 + $0x3c] sm:$0xf]
  %v39 = vld [vmem:[%s1 + $0x40] sm:$0xf]
  %v40 = vld [vmem:[%s1 + $0x44] sm:$0xf]
  %v41 = vld [vmem:[%s1 + $0x48] sm:$0xf]
  %v42 = vld [vmem:[%s1 + $0x4c] sm:$0xf]
  %v43 = vld [vmem:[%s1 + $0x50] sm:$0xf]
  %v44 = vld [vmem:[%s1 + $0x54] sm:$0xf]
  %v45 = vld [vmem:[%s1 + $0x58] sm:$0xf]
  %v46 = vld [vmem:[%s1 + $0x5c] sm:$0xf]
  %v47 = vld [vmem:[%s1 + $0x60] sm:$0xf]
  %v48 = vld [vmem:[%s1 + $0x64] sm:$0xf]
  %v49 = vld [vmem:[%s1 + $0x68] sm:$0xf]
  %v50 = vld [vmem:[%s1 + $0x6c] sm:$0xf]
  %v51 = vld [vmem:[%s1 + $0x70] sm:$0xf]
  %v52 = vld [vmem:[%s1 + $0x74] sm:$0xf]
  %v53 = vld [vmem:[%s1 + $0x78] sm:$0xf]
  %v54 = vld [vmem:[%s1 + $0x7c] sm:$0xf]
  %v57 = vunpack.c.l.s4 1966171168
  %v58 = vunpack.c.0.s8 %v57
  %v59 = vlaneseq
  %v60 = vshrl.u32 %v59, 7
  %v61 = vsub.s32 %v58, %v60
  %v62 = vrot.slane %v22, %v61
  %v63 = vcombine.high %v62, %v62
  %v65 = vunpack.c.l.s4 1966171168
  %v66 = vunpack.c.0.s8 %v65
  %v67 = vlaneseq
  %v68 = vshrl.u32 %v67, 7
  %v69 = vsub.s32 %v66, %v68
  %v70 = vrot.slane %v62, %v69
  %v72 = vunpack.c.l.s4 1966171168
  %v73 = vunpack.c.0.s8 %v72
  %v74 = vlaneseq
  %v75 = vshrl.u32 %v74, 7
  %v76 = vsub.s32 %v73, %v75
  %v77 = vrot.slane %v63, %v76
  %v112 = vunpack.c.l.b16 %v23
  %v113 = vunpack.c.l.b16 %v24
  %v114 = vunpack.c.l.b16 %v25
  %v115 = vunpack.c.l.b16 %v26
  %v116 = vunpack.c.l.b16 %v27
  %v117 = vunpack.c.l.b16 %v28
  %v118 = vunpack.c.l.b16 %v29
  %v119 = vunpack.c.l.b16 %v30
  %v120 = vunpack.c.l.b16 %v31
  %v121 = vunpack.c.l.b16 %v32
  %v122 = vunpack.c.l.b16 %v33
  %v123 = vunpack.c.l.b16 %v34
  %v124 = vunpack.c.l.b16 %v35
  %v125 = vunpack.c.l.b16 %v36
  %v126 = vunpack.c.l.b16 %v37
  %v127 = vunpack.c.l.b16 %v38
  %v128 = vunpack.c.l.b16 %v39
  %v129 = vunpack.c.l.b16 %v40
  %v130 = vunpack.c.l.b16 %v41
  %v131 = vunpack.c.l.b16 %v42
  %v132 = vunpack.c.l.b16 %v43
  %v133 = vunpack.c.l.b16 %v44
  %v134 = vunpack.c.l.b16 %v45
  %v135 = vunpack.c.l.b16 %v46
  %v136 = vunpack.c.l.b16 %v47
  %v137 = vunpack.c.l.b16 %v48
  %v138 = vunpack.c.l.b16 %v49
  %v139 = vunpack.c.l.b16 %v50
  %v140 = vunpack.c.l.b16 %v51
  %v141 = vunpack.c.l.b16 %v52
  %v142 = vunpack.c.l.b16 %v53
  %v143 = vunpack.c.l.b16 %v54
  %v144 = vpack.c.b16 %v113, %v112
  %v145 = vpack.c.b16 %v115, %v114
  %v146 = vpack.c.b16 %v117, %v116
  %v147 = vpack.c.b16 %v119, %v118
  %v148 = vpack.c.b16 %v121, %v120
  %v149 = vpack.c.b16 %v123, %v122
  %v150 = vpack.c.b16 %v125, %v124
  %v151 = vpack.c.b16 %v127, %v126
  %v152 = vpack.c.b16 %v129, %v128
  %v153 = vpack.c.b16 %v131, %v130
  %v154 = vpack.c.b16 %v133, %v132
  %v155 = vpack.c.b16 %v135, %v134
  %v156 = vpack.c.b16 %v137, %v136
  %v157 = vpack.c.b16 %v139, %v138
  %v158 = vpack.c.b16 %v141, %v140
  %v159 = vpack.c.b16 %v143, %v142
  %176 = vmatprep.subr.bf16.mxu0 0
  %177 = vmatpush1.bf16.msra.mxu0 %v144
  %178 = vmatprep.subr.bf16.mxu0 0
  %179 = vmatpush1.bf16.msra.mxu0 %v145
  %180 = vmatprep.subr.bf16.mxu0 0
  %181 = vmatpush1.bf16.msra.mxu0 %v146
  %182 = vmatprep.subr.bf16.mxu0 0
  %183 = vmatpush1.bf16.msra.mxu0 %v147
  %184 = vmatprep.subr.bf16.mxu0 0
  %185 = vmatpush1.bf16.msra.mxu0 %v148
  %186 = vmatprep.subr.bf16.mxu0 0
  %187 = vmatpush1.bf16.msra.mxu0 %v149
  %188 = vmatprep.subr.bf16.mxu0 0
  %189 = vmatpush1.bf16.msra.mxu0 %v150
  %190 = vmatprep.subr.bf16.mxu0 0
  %191 = vmatpush1.bf16.msra.mxu0 %v151
  %192 = vmatprep.subr.bf16.mxu0 0
  %193 = vmatpush1.bf16.msra.mxu0 %v152
  %194 = vmatprep.subr.bf16.mxu0 0
  %195 = vmatpush1.bf16.msra.mxu0 %v153
  %196 = vmatprep.subr.bf16.mxu0 0
  %197 = vmatpush1.bf16.msra.mxu0 %v154
  %198 = vmatprep.subr.bf16.mxu0 0
  %199 = vmatpush1.bf16.msra.mxu0 %v155
  %200 = vmatprep.subr.bf16.mxu0 0
  %201 = vmatpush1.bf16.msra.mxu0 %v156
  %202 = vmatprep.subr.bf16.mxu0 0
  %203 = vmatpush1.bf16.msra.mxu0 %v157
  %204 = vmatprep.subr.bf16.mxu0 0
  %205 = vmatpush1.bf16.msra.mxu0 %v158
  %206 = vmatprep.subr.bf16.mxu0 0
  %207 = vmatpush1.bf16.msra.mxu0 %v159
  %208 = vmatprep.mubr.bf16.mxu0 %v77
  %209 = vmatmul.mubr.bf16.gmra.mrb[0].mxu0 %v70
  %v210 = vpop.f32.mrb[0].mxu0
  %v211 = vadd.f32 0.0, %v210
  %v212 = vpop.f32.mrb[0].mxu0
  %v213 = vpop.f32.mrb[0].mxu0
  %v214 = vpop.f32.mrb[0].mxu0
  %215 = vdwg.mxu0
  %v216 = vadd.f32 %v21, %v211
  %vm217 = vcmask 254976
  %218 = vst.msk [vmem:[#allocation2] sm:$0x3] %vm217, %v216
  // Predicated region
  $region18: #{cnn2d_forward.6} parent=0 // pred_check
    %p219 = pneg %p15
  $region19: #{cnn2d_forward.6} parent=0 // pred_check_branch
    %221 = sbr.rel (%p219) target = $region21
  $region20: #{cnn2d_forward.6} parent=0 // pred_region
    %v222 = vld [vmem:[#allocation2] sm:$0x3]
    %v223 = vld [vmem:[%s2] sm:$0x1]
    %v225 = vlaneseq
    %v226 = vshrl.u32 %v225, 7
    %v227 = vsub.s32 0, %v226
    %v228 = vrot.slane %v223, %v227
    %v230 = vadd.f32 %v222, %v228
    %v231 = vmax.f32 %v230, 0.0
    %232 = vst.msk [vmem:[%s3] sm:$0x3] %vm217, %v231
  $region21: #{cnn2d_forward.6} parent=0 // pred_fallthru
    _
  // Predicated region
  $region22: #{cnn2d_forward.6} parent=0 // pred_check
    _
  $region23: #{cnn2d_forward.6} parent=0 // pred_check_branch
    %234 = sbr.rel (0) target = $region25
  $region24: #{cnn2d_forward.6} parent=0 // pred_region
    _
  $region25: #{cnn2d_forward.6} parent=0 // pred_fallthru
    _
  // Predicated region
  $region26: #{cnn2d_forward.6} parent=0 // pred_check
    _
  $region27: #{cnn2d_forward.6} parent=0 // pred_check_branch
    %236 = sbr.rel (0) target = $region29
  $region28: #{cnn2d_forward.6} parent=0 // pred_region
    _
  $region29: #{cnn2d_forward.6} parent=0 // pred_fallthru
    _

// kernel: cnn2d_forward.7
$region0: #{cnn2d_forward.7}
  #allocation0 [shape = 'u32[]', space=smem, size = 0x4, offset = 0x4, fixed_abs, tag = 'smem constant byte address 0x4 - core index']
  #allocation1 [shape = 'u32[144,128]{1,0:T(1,128)}', space=vmem, size = 0x12000, scoped, tag = 'internal scratch']
  #allocation2 [shape = 'f32[2,10]{1,0:T(2,128)}', space=vmem, size = 0x400, scoped, tag = 'scratch operand']
  %s0 = inlined_call_operand.vmem [shape: bf16[2,32], index: 0, kind: input, shape index: {}]
  %s1 = inlined_call_operand.vmem [shape: bf16[32,10], index: 1, kind: input, shape index: {}]
  %s2 = inlined_call_operand.vmem [shape: f32[1,10], index: 2, kind: input, shape index: {}]
  %s3 = inlined_call_operand.hbm [shape: f32[2,10], index: 3, kind: output, shape index: {}]
  %s4 = sld [smem:[#allocation0]]
  $region30: #{cnn2d_forward.7} parent=0
    _
  %s6 = ssub.s32 1, %s4
  %s7 = scalar_select 0, %s6, %s4
  $region1: #{cnn2d_forward.7} parent=0
    #allocation3 [shape = 'u8[1024]{0}', space=vmem, size = 0x400, scoped, tag = 'output window, operand 0, single buffered']
    #allocation4 [shape = 's32[1]{0}', space=sflag, size = 0x4, scoped, tag = 'scoped memory for cnn2d_forward.7']
    %8 = vsyncpa [#allocation4], 0
    // Predicated region
    $region2: #{cnn2d_forward.7} parent=1 // pred_check
      _
    $region3: #{cnn2d_forward.7} parent=1 // pred_check_branch
      %10 = sbr.rel (0) target = $region5
    $region4: #{cnn2d_forward.7} parent=1 // pred_region
      _
    $region5: #{cnn2d_forward.7} parent=1 // pred_fallthru
      _
    // Predicated region
    $region6: #{cnn2d_forward.7} parent=1 // pred_check
      _
    $region7: #{cnn2d_forward.7} parent=1 // pred_check_branch
      %12 = sbr.rel (0) target = $region9
    $region8: #{cnn2d_forward.7} parent=1 // pred_region
      _
    $region9: #{cnn2d_forward.7} parent=1 // pred_fallthru
      _
    // Predicated region
    $region10: #{cnn2d_forward.7} parent=1 // pred_check
      _
    $region11: #{cnn2d_forward.7} parent=1 // pred_check_branch
      %14 = sbr.rel (0) target = $region13
    $region12: #{cnn2d_forward.7} parent=1 // pred_region
      _
    $region13: #{cnn2d_forward.7} parent=1 // pred_fallthru
      _
    %p16 = scmp.eq.s32.totalorder 0, 0
    // Predicated region
    $region14: #{cnn2d_forward.7} parent=1 // pred_check
      %p17 = pneg %p16
    $region15: #{cnn2d_forward.7} parent=1 // pred_check_branch
      %19 = sbr.rel (%p17) target = $region17
    $region16: #{cnn2d_forward.7} parent=1 // pred_region
      %vm20 = vcmask 74752
      %21 = vst.msk [vmem:[#allocation2] sm:$0x3] %vm20, 0.0
    $region17: #{cnn2d_forward.7} parent=1 // pred_fallthru
      _
    %v22 = vld [vmem:[#allocation2] sm:$0x3]
    %v23 = vld [vmem:[%s0] sm:$0x1]
    %v24 = vld [vmem:[%s1] sm:$0xf]
    %v25 = vld [vmem:[%s1 + $0x4] sm:$0xf]
    %v26 = vld [vmem:[%s1 + $0x8] sm:$0xf]
    %v27 = vld [vmem:[%s1 + $0xc] sm:$0xf]
    %v32 = vunpack.c.l.b16 %v24
    %v33 = vunpack.c.l.b16 %v25
    %v34 = vunpack.c.l.b16 %v26
    %v35 = vunpack.c.l.b16 %v27
    %v36 = vpack.c.b16 %v33, %v32
    %v37 = vpack.c.b16 %v35, %v34
    %vm40 = vcmask 261120
    %v42 = vsel %vm40, %v23, 0
    %44 = vmatprep.subr.bf16.mxu0 0
    %45 = vmatpush1.bf16.msra.mxu0 %v36
    %46 = vmatprep.subr.bf16.mxu0 0
    %47 = vmatpush1.bf16.msra.mxu0 %v37
    %48 = vmatprep.subr.bf16.mxu0 0
    %49 = vmatpush1.bf16.msra.mxu0 0
    %50 = vmatprep.subr.bf16.mxu0 0
    %51 = vmatpush1.bf16.msra.mxu0 0
    %52 = vmatprep.subr.bf16.mxu0 0
    %53 = vmatpush1.bf16.msra.mxu0 0
    %54 = vmatprep.subr.bf16.mxu0 0
    %55 = vmatpush1.bf16.msra.mxu0 0
    %56 = vmatprep.subr.bf16.mxu0 0
    %57 = vmatpush1.bf16.msra.mxu0 0
    %58 = vmatprep.subr.bf16.mxu0 0
    %59 = vmatpush1.bf16.msra.mxu0 0
    %60 = vmatprep.subr.bf16.mxu0 0
    %61 = vmatpush1.bf16.msra.mxu0 0
    %62 = vmatprep.subr.bf16.mxu0 0
    %63 = vmatpush1.bf16.msra.mxu0 0
    %64 = vmatprep.subr.bf16.mxu0 0
    %65 = vmatpush1.bf16.msra.mxu0 0
    %66 = vmatprep.subr.bf16.mxu0 0
    %67 = vmatpush1.bf16.msra.mxu0 0
    %68 = vmatprep.subr.bf16.mxu0 0
    %69 = vmatpush1.bf16.msra.mxu0 0
    %70 = vmatprep.subr.bf16.mxu0 0
    %71 = vmatpush1.bf16.msra.mxu0 0
    %72 = vmatprep.subr.bf16.mxu0 0
    %73 = vmatpush1.bf16.msra.mxu0 0
    %74 = vmatprep.subr.bf16.mxu0 0
    %75 = vmatpush1.bf16.msra.mxu0 0
    %76 = vmatprep.mubr.bf16.mxu0 0
    %77 = vmatmul.mubr.bf16.gmra.mrb[0].mxu0 %v42
    %v78 = vpop.f32.mrb[0].mxu0
    %v79 = vadd.f32 0.0, %v78
    %v80 = vpop.f32.mrb[0].mxu0
    %v81 = vpop.f32.mrb[0].mxu0
    %v82 = vpop.f32.mrb[0].mxu0
    %83 = vdwg.mxu0
    %v84 = vadd.f32 %v22, %v79
    %vm85 = vcmask 74752
    %86 = vst.msk [vmem:[#allocation2] sm:$0x3] %vm85, %v84
    // Predicated region
    $region18: #{cnn2d_forward.7} parent=1 // pred_check
      %p87 = pneg %p16
    $region19: #{cnn2d_forward.7} parent=1 // pred_check_branch
      %89 = sbr.rel (%p87) target = $region21
    $region20: #{cnn2d_forward.7} parent=1 // pred_region
      %v90 = vld [vmem:[#allocation2] sm:$0x3]
      %v91 = vld [vmem:[%s2] sm:$0x1]
      %v93 = vlaneseq
      %v94 = vshrl.u32 %v93, 7
      %v95 = vsub.s32 0, %v94
      %v96 = vrot.slane %v91, %v95
      %v98 = vadd.f32 %v90, %v96
      %99 = vst.msk [vmem:[#allocation3] sm:$0x3] %vm85, %v98
    $region21: #{cnn2d_forward.7} parent=1 // pred_fallthru
      _
    // Predicated region
    $region22: #{cnn2d_forward.7} parent=1 // pred_check
      _
    $region23: #{cnn2d_forward.7} parent=1 // pred_check_branch
      %101 = sbr.rel (0) target = $region25
    $region24: #{cnn2d_forward.7} parent=1 // pred_region
      %s103 = ssub.s32 32, 32
      %104 = vsyncadd [#allocation4], %s103
      %s106 = sshll.u32 [#allocation3], 4
      %s107 = int_to_ptr.vmem [resolvable:$true] %s106
      %109 = dma.vmem_to_hbm [thread:$0]  %s107, 32, %s3, [#allocation4]
    $region25: #{cnn2d_forward.7} parent=1 // pred_fallthru
      _
    // Predicated region
    $region26: #{cnn2d_forward.7} parent=1 // pred_check
      _
    $region27: #{cnn2d_forward.7} parent=1 // pred_check_branch
      %111 = sbr.rel (0) target = $region29
    $region28: #{cnn2d_forward.7} parent=1 // pred_region
      %112 = dma.done [#allocation4], 32
    $region29: #{cnn2d_forward.7} parent=1 // pred_fallthru
      _
    %113 = vsyncpa [#allocation4], 1

</llo_original>
